<compile_context>
chip_gen: v7x
topology: tpu7x:2x2x1
jax: 0.10.0
libtpu: 0.0.40
codegen_flags: <defaults>
</compile_context>

<pallas_src>
import functools

import jax
import jax.numpy as jnp
from jax import lax
from jax.experimental import pallas as pl
from jax.experimental.pallas import tpu as pltpu


def _round_up(x, m):
    return ((x + m - 1) // m) * m


def _vmem_limit_bytes():
    # Per-generation VMEM budget with headroom (v5e/v6e: 128 MiB, v7x: 64 MiB).
    try:
        cap = pltpu.get_tpu_info().vmem_capacity_bytes
    except Exception:
        cap = 64 * 1024 * 1024  # conservative fallback (v7x per-TC size)
    return int(min(cap * 3 // 4, 100 * 1024 * 1024))


# ----------------------------------------------------------------------------
# Fused Pallas kernel
# ----------------------------------------------------------------------------
def make_fused_cnn_kernel(kernel_sizes, num_filters, seq_len, batch_tile,
                          vocab_pad, num_classes, out_width):
    KS = tuple(kernel_sizes)
    F = num_filters
    L = seq_len
    TB = batch_tile
    VP = vocab_pad
    C = num_classes
    NB = len(KS)
    FT = NB * F
    COLS = sum(KS) * F
    PADW = out_width

    def kernel(tok_ref,      # VMEM (TB, L) int32     token ids
               table_ref,    # VMEM (VP, D) f32       zero-padded embedding table
               wbig_ref,     # VMEM (D, COLS) f32     packed conv weights
               cbias_ref,    # VMEM (NB, F) f32       conv biases
               fcw_ref,      # VMEM (FT, C) f32       block-major FC weight
               fcb_ref,      # VMEM (1, C) f32        FC bias
               out_ref):     # VMEM (TB, PADW) f32    [probs | block-major feats | 0]
        # ---- 1. embedding lookup as a one-hot MXU matmul -------------------
        # Replaces the serial per-token gather loop; out-of-range ids simply
        # produce a zero embedding (no OOB VMEM read).
        tok = tok_ref[...]                                          # (TB, L) i32
        vio = lax.broadcasted_iota(jnp.int32, (TB, L, VP), 2)
        onehot = jnp.where(tok[:, :, None] == vio, 1.0, 0.0)        # (TB, L, VP)
        emb = jnp.dot(onehot.reshape(TB * L, VP), table_ref[...],
                      preferred_element_type=jnp.float32)           # (TB*L, D)

        # ---- 2. every conv bank & shift in ONE lane-dense MXU matmul -------
        m = jnp.dot(emb, wbig_ref[...],
                    preferred_element_type=jnp.float32)             # (TB*L, COLS)
        m = m.reshape(TB, L, COLS)

        # ---- 3. implicit unfold: conv = sum of shifted column slices -------
        # (At production seq_len: chunk the time axis with a running per-bank
        #  max and/or do the shifts with pltpu.roll so they land on the XLU
        #  slot; at L=16 the k-1 shifted slices per bank are negligible.)
        cbias = cbias_ref[...]                                      # (NB, F)
        pooled = []
        col = 0
        for i, k in enumerate(KS):
            T = L - k + 1
            acc = m[:, 0:T, col:col + F]
            for j in range(1, k):
                acc = acc + m[:, j:j + T, col + j * F:col + (j + 1) * F]
            acc = acc + cbias[i:i + 1, :]                           # conv bias
            acc = jnp.maximum(acc, 0.0)                             # ReLU
            pooled.append(jnp.max(acc, axis=1))                     # max over time
            col += k * F
        feat_bm = jnp.concatenate(pooled, axis=1)                   # (TB, FT)

        # ---- 4. Linear + softmax (dropout == identity at inference) --------
        logits = jnp.dot(feat_bm, fcw_ref[...],
                         preferred_element_type=jnp.float32) + fcb_ref[...]
        mx = jnp.max(logits, axis=-1, keepdims=True)
        e = jnp.exp(logits - mx)
        probs = e * pl.reciprocal(jnp.sum(e, axis=-1, keepdims=True),
                                  approx=True)

        # ---- 5. one lane-dense 128-wide store: [probs | feats | zero pad] --
        pieces = [probs, feat_bm]
        pad_w = PADW - C - FT
        if pad_w > 0:
            pieces.append(jnp.zeros((TB, pad_w), jnp.float32))
        out_ref[...] = jnp.concatenate(pieces, axis=1)

    return kernel


# ----------------------------------------------------------------------------
# Wrapper
# ----------------------------------------------------------------------------
@functools.partial(jax.jit, static_argnames=("kernel_sizes", "batch_tile"))
def cnn_forward(tokens, emb_table, conv_ws, conv_bs, fc_w, fc_b,
                kernel_sizes=(3, 4, 5), batch_tile=None):
    """Kim-CNN forward (inference).

    tokens:    (B, L) int32
    emb_table: (V, D) f32                 nn.Embedding weight
    conv_ws:   tuple of (F, D, k) f32     torch Conv1d weights
    conv_bs:   tuple of (F,) f32          torch Conv1d biases
    fc_w:      (C, NB*F) f32              torch Linear weight
    fc_b:      (C,) f32                   torch Linear bias
    Returns (softmax probs (B, C), feature_extracted (B, NB*F) in torch order).
    """
    B, L = tokens.shape
    V, D = emb_table.shape
    F = conv_ws[0].shape[0]
    C = fc_w.shape[0]
    NB = len(kernel_sizes)
    FT = NB * F
    COLS = sum(kernel_sizes) * F

    TB = B if batch_tile is None else batch_tile
    assert B % TB == 0, "batch must divide evenly into batch tiles"
    assert TB == B or TB % 8 == 0, "batch_tile must be a multiple of 8 (or == B)"

    # Pad vocab to a lane multiple so the one-hot matmul K dim is aligned.
    VP = _round_up(V, 128)
    # Single padded output slab: [probs (C) | block-major feats (FT) | zeros].
    PADW = _round_up(C + FT, 128)

    # ---- pack weights -------------------------------------------------------
    table_p = jnp.pad(emb_table.astype(jnp.float32), ((0, VP - V), (0, 0)))
    # wbig[d, col_i + j*F + f] = conv_w_i[f, d, j]  (columns: bank | shift | filter)
    wbig = jnp.concatenate(
        [jnp.transpose(w, (1, 2, 0)).reshape(D, k * F)
         for k, w in zip(kernel_sizes, conv_ws)], axis=1)           # (D, COLS)
    cbias = jnp.stack(conv_bs, axis=0)                              # (NB, F)
    # torch feature order is filter-major (idx = f*NB + i); the kernel emits
    # block-major features (idx = i*F + f) -> permute the FC weight to match.
    fcw_bm = fc_w.T.reshape(F, NB, C).transpose(1, 0, 2).reshape(FT, C)
    fcb = fc_b.reshape(1, C)

    # Grid-invariant operands: single-buffer them (halves their VMEM footprint).
    invariant = dict(pipeline_mode=pl.Buffered(1))

    grid_spec = pltpu.PrefetchScalarGridSpec(
        num_scalar_prefetch=0,
        grid=(B // TB,),
        in_specs=[
            pl.BlockSpec((TB, L), lambda bt: (bt, 0)),                 # tokens
            pl.BlockSpec((VP, D), lambda bt: (0, 0), **invariant),     # emb table
            pl.BlockSpec((D, COLS), lambda bt: (0, 0), **invariant),   # conv w
            pl.BlockSpec((NB, F), lambda bt: (0, 0), **invariant),     # conv b
            pl.BlockSpec((FT, C), lambda bt: (0, 0), **invariant),     # fc w
            pl.BlockSpec((1, C), lambda bt: (0, 0), **invariant),      # fc b
        ],
        out_specs=pl.BlockSpec((TB, PADW), lambda bt: (bt, 0)),
    )

    out = pl.pallas_call(
        make_fused_cnn_kernel(kernel_sizes, F, L, TB, VP, C, PADW),
        out_shape=jax.ShapeDtypeStruct((B, PADW), jnp.float32),
        grid_spec=grid_spec,
        compiler_params=pltpu.CompilerParams(
            dimension_semantics=("parallel",),      # batch tiles -> both TCs on v7x
            vmem_limit_bytes=_vmem_limit_bytes()),
    )(tokens.astype(jnp.int32), table_p, wbig, cbias, fcw_bm, fcb)

    # Split the padded slab and re-order features to torch's interleaved
    # layout (tiny (B, 128) slice/permute kept outside the kernel so the
    # in-kernel store stays lane-dense).
    probs = out[:, :C]
    feat_bm = out[:, C:C + FT]
    feat = feat_bm.reshape(B, NB, F).transpose(0, 2, 1).reshape(B, FT)
    return probs, feat


# ----------------------------------------------------------------------------
# Pure-JAX reference (mirrors the torch module) for verification
# ----------------------------------------------------------------------------
def cnn_forward_ref(tokens, emb_table, conv_ws, conv_bs, fc_w, fc_b,
                    kernel_sizes=(3, 4, 5)):
    emb = jnp.take(emb_table, tokens, axis=0)                       # (B, L, D)
    B, L, _ = emb.shape
    pooled = []
    for k, w, b in zip(kernel_sizes, conv_ws, conv_bs):
        T = L - k + 1
        win = jnp.stack([emb[:, j:j + T, :] for j in range(k)], axis=3)  # (B,T,D,k)
        s = jnp.einsum("btdj,fdj->btf", win, w) + b
        pooled.append(jnp.max(jnp.maximum(s, 0.0), axis=1))         # (B, F)
    feat = jnp.stack(pooled, axis=2).reshape(B, -1)                 # torch order
    logits = feat @ fc_w.T + fc_b
    return jax.nn.softmax(logits, axis=1), feat


# ----------------------------------------------------------------------------
if __name__ == "__main__":
    B = 32                   # batch
    L = 16                   # sentence_len
    D = 32                   # embedding_dim
    NUM_FILTERS = 16         # num_filters
    KERNEL_SIZES = (3, 4, 5)
    NUM_CLASSES = 4
    VOCAB = 50
    BATCH_TILE = 16          # TB*L = 256 fills MXU M dim; grid=(2,), "parallel"

    key = jax.random.PRNGKey(0)
    keys = jax.random.split(key, 4 + 2 * len(KERNEL_SIZES))

    tokens = jax.random.randint(keys[0], (B, L), 0, VOCAB, dtype=jnp.int32)
    emb_table = jax.random.normal(keys[1], (VOCAB, D), jnp.float32) * 0.1

    conv_ws, conv_bs = [], []
    for i, k in enumerate(KERNEL_SIZES):
        # Torch Conv1d weight layout: (out=F, in=D, kernel=k)
        w = jax.random.normal(keys[2 + 2 * i], (NUM_FILTERS, D, k),
                              jnp.float32) * 0.1
        b = jax.random.normal(keys[3 + 2 * i], (NUM_FILTERS,), jnp.float32) * 0.1
        conv_ws.append(w)
        conv_bs.append(b)

    # Torch Linear layout: weight (C, F_total), bias (C,)
    fc_w = jax.random.normal(keys[-2], (NUM_CLASSES,
                                        NUM_FILTERS * len(KERNEL_SIZES)),
                             jnp.float32) * 0.1
    fc_b = jax.random.normal(keys[-1], (NUM_CLASSES,), jnp.float32) * 0.1

    probs, feat = cnn_forward(tokens, emb_table, tuple(conv_ws), tuple(conv_bs),
                              fc_w, fc_b, kernel_sizes=KERNEL_SIZES,
                              batch_tile=BATCH_TILE)
    probs, feat = jax.block_until_ready((probs, feat))

    probs_ref, feat_ref = cnn_forward_ref(tokens, emb_table, conv_ws, conv_bs,
                                          fc_w, fc_b, KERNEL_SIZES)

    assert probs.shape == (B, NUM_CLASSES)
    assert feat.shape == (B, NUM_FILTERS * len(KERNEL_SIZES))
    # Features are an exact-f32 path -> tight tolerance.
    assert jnp.allclose(feat, feat_ref, atol=2e-5, rtol=2e-5)
    # Probs use the EUP approximate reciprocal in the softmax -> relaxed.
    assert jnp.allclose(probs, probs_ref, atol=1e-3, rtol=1e-3)

    print("KERNEL_OK")
</pallas_src>

<mosaic_0001>
module attributes {stable_mosaic.version = 11 : i64} {
  func.func @kernel(%arg0: i32, %arg1: memref<16x16xi32, #tpu.memory_space<vmem>>, %arg2: memref<128x32xf32, #tpu.memory_space<vmem>>, %arg3: memref<32x192xf32, #tpu.memory_space<vmem>>, %arg4: memref<3x16xf32, #tpu.memory_space<vmem>>, %arg5: memref<48x4xf32, #tpu.memory_space<vmem>>, %arg6: memref<1x4xf32, #tpu.memory_space<vmem>>, %arg7: memref<16x128xf32, #tpu.memory_space<vmem>>) attributes {dimension_semantics = [#tpu.dimension_semantics<parallel>], iteration_bounds = array<i64: 2>, scalar_prefetch = 0 : i64, scratch_operands = 0 : i64, tpu.core_type = #tpu.core_type<tc>, window_params = [{transform_indices = @transform_0, window_bounds = array<i64: 16, 16>}, {pipeline_mode = #tpu.pipeline_mode<synchronous>, transform_indices = @transform_1, window_bounds = array<i64: 128, 32>}, {pipeline_mode = #tpu.pipeline_mode<synchronous>, transform_indices = @transform_2, window_bounds = array<i64: 32, 192>}, {pipeline_mode = #tpu.pipeline_mode<synchronous>, transform_indices = @transform_3, window_bounds = array<i64: 3, 16>}, {pipeline_mode = #tpu.pipeline_mode<synchronous>, transform_indices = @transform_4, window_bounds = array<i64: 48, 4>}, {pipeline_mode = #tpu.pipeline_mode<synchronous>, transform_indices = @transform_5, window_bounds = array<i64: 1, 4>}, {transform_indices = @transform_6, window_bounds = array<i64: 16, 128>}]} {
    %c0 = arith.constant 0 : index
    %c0_0 = arith.constant 0 : index
    %0 = vector.load %arg1[%c0, %c0_0] : memref<16x16xi32, #tpu.memory_space<vmem>>, vector<16x16xi32>
    %1 = tpu.iota {dimensions = array<i32: 2>} : vector<16x16x128xi32>
    %2 = vector.shape_cast %0 : vector<16x16xi32> to vector<16x16x1xi32>
    %3 = vector.broadcast %2 : vector<16x16x1xi32> to vector<16x16x128xi32>
    %4 = arith.cmpi eq, %3, %1 : vector<16x16x128xi32>
    %cst = arith.constant 1.000000e+00 : f32
    %cst_1 = arith.constant 0.000000e+00 : f32
    %5 = vector.broadcast %cst : f32 to vector<16x16x128xf32>
    %6 = vector.broadcast %cst_1 : f32 to vector<16x16x128xf32>
    %7 = arith.select %4, %5, %6 : vector<16x16x128xi1>, vector<16x16x128xf32>
    %8 = vector.shape_cast %7 : vector<16x16x128xf32> to vector<256x128xf32>
    %c0_2 = arith.constant 0 : index
    %c0_3 = arith.constant 0 : index
    %9 = vector.load %arg2[%c0_2, %c0_3] : memref<128x32xf32, #tpu.memory_space<vmem>>, vector<128x32xf32>
    %cst_4 = arith.constant dense<0.000000e+00> : vector<256x32xf32>
    %10 = tpu.matmul %8, %9, %cst_4 {dimension_numbers = #tpu.dot_dimension_numbers<[1], [0], [0], [1], [0, 0, 1, 1], [], []>} : vector<256x128xf32>, vector<128x32xf32>, vector<256x32xf32> -> vector<256x32xf32>
    %c0_5 = arith.constant 0 : index
    %c0_6 = arith.constant 0 : index
    %11 = vector.load %arg3[%c0_5, %c0_6] : memref<32x192xf32, #tpu.memory_space<vmem>>, vector<32x192xf32>
    %cst_7 = arith.constant dense<0.000000e+00> : vector<256x192xf32>
    %12 = tpu.matmul %10, %11, %cst_7 {dimension_numbers = #tpu.dot_dimension_numbers<[1], [0], [0], [1], [0, 0, 1, 1], [], []>} : vector<256x32xf32>, vector<32x192xf32>, vector<256x192xf32> -> vector<256x192xf32>
    %13 = vector.shape_cast %12 : vector<256x192xf32> to vector<16x16x192xf32>
    %c0_8 = arith.constant 0 : index
    %c0_9 = arith.constant 0 : index
    %14 = vector.load %arg4[%c0_8, %c0_9] : memref<3x16xf32, #tpu.memory_space<vmem>>, vector<3x16xf32>
    %15 = vector.extract_strided_slice %13 {offsets = [0, 0, 0], sizes = [16, 14, 16], strides = [1, 1, 1]} : vector<16x16x192xf32> to vector<16x14x16xf32>
    %16 = vector.extract_strided_slice %13 {offsets = [0, 1, 16], sizes = [16, 14, 16], strides = [1, 1, 1]} : vector<16x16x192xf32> to vector<16x14x16xf32>
    %17 = arith.addf %15, %16 : vector<16x14x16xf32>
    %18 = vector.extract_strided_slice %13 {offsets = [0, 2, 32], sizes = [16, 14, 16], strides = [1, 1, 1]} : vector<16x16x192xf32> to vector<16x14x16xf32>
    %19 = arith.addf %17, %18 : vector<16x14x16xf32>
    %20 = vector.extract_strided_slice %14 {offsets = [0, 0], sizes = [1, 16], strides = [1, 1]} : vector<3x16xf32> to vector<1x16xf32>
    %21 = vector.shape_cast %20 : vector<1x16xf32> to vector<1x1x16xf32>
    %22 = vector.broadcast %21 : vector<1x1x16xf32> to vector<16x14x16xf32>
    %23 = arith.addf %19, %22 : vector<16x14x16xf32>
    %cst_10 = arith.constant 0.000000e+00 : f32
    %24 = vector.broadcast %cst_10 : f32 to vector<16x14x16xf32>
    %25 = arith.maximumf %23, %24 : vector<16x14x16xf32>
    %cst_11 = arith.constant dense<0xFF800000> : vector<16x16xf32>
    %26 = vector.multi_reduction <maximumf>, %25, %cst_11 [1] : vector<16x14x16xf32> to vector<16x16xf32>
    %27 = vector.extract_strided_slice %13 {offsets = [0, 0, 48], sizes = [16, 13, 16], strides = [1, 1, 1]} : vector<16x16x192xf32> to vector<16x13x16xf32>
    %28 = vector.extract_strided_slice %13 {offsets = [0, 1, 64], sizes = [16, 13, 16], strides = [1, 1, 1]} : vector<16x16x192xf32> to vector<16x13x16xf32>
    %29 = arith.addf %27, %28 : vector<16x13x16xf32>
    %30 = vector.extract_strided_slice %13 {offsets = [0, 2, 80], sizes = [16, 13, 16], strides = [1, 1, 1]} : vector<16x16x192xf32> to vector<16x13x16xf32>
    %31 = arith.addf %29, %30 : vector<16x13x16xf32>
    %32 = vector.extract_strided_slice %13 {offsets = [0, 3, 96], sizes = [16, 13, 16], strides = [1, 1, 1]} : vector<16x16x192xf32> to vector<16x13x16xf32>
    %33 = arith.addf %31, %32 : vector<16x13x16xf32>
    %34 = vector.extract_strided_slice %14 {offsets = [1, 0], sizes = [1, 16], strides = [1, 1]} : vector<3x16xf32> to vector<1x16xf32>
    %35 = vector.shape_cast %34 : vector<1x16xf32> to vector<1x1x16xf32>
    %36 = vector.broadcast %35 : vector<1x1x16xf32> to vector<16x13x16xf32>
    %37 = arith.addf %33, %36 : vector<16x13x16xf32>
    %cst_12 = arith.constant 0.000000e+00 : f32
    %38 = vector.broadcast %cst_12 : f32 to vector<16x13x16xf32>
    %39 = arith.maximumf %37, %38 : vector<16x13x16xf32>
    %cst_13 = arith.constant dense<0xFF800000> : vector<16x16xf32>
    %40 = vector.multi_reduction <maximumf>, %39, %cst_13 [1] : vector<16x13x16xf32> to vector<16x16xf32>
    %41 = vector.extract_strided_slice %13 {offsets = [0, 0, 112], sizes = [16, 12, 16], strides = [1, 1, 1]} : vector<16x16x192xf32> to vector<16x12x16xf32>
    %42 = vector.extract_strided_slice %13 {offsets = [0, 1, 128], sizes = [16, 12, 16], strides = [1, 1, 1]} : vector<16x16x192xf32> to vector<16x12x16xf32>
    %43 = arith.addf %41, %42 : vector<16x12x16xf32>
    %44 = vector.extract_strided_slice %13 {offsets = [0, 2, 144], sizes = [16, 12, 16], strides = [1, 1, 1]} : vector<16x16x192xf32> to vector<16x12x16xf32>
    %45 = arith.addf %43, %44 : vector<16x12x16xf32>
    %46 = vector.extract_strided_slice %13 {offsets = [0, 3, 160], sizes = [16, 12, 16], strides = [1, 1, 1]} : vector<16x16x192xf32> to vector<16x12x16xf32>
    %47 = arith.addf %45, %46 : vector<16x12x16xf32>
    %48 = vector.extract_strided_slice %13 {offsets = [0, 4, 176], sizes = [16, 12, 16], strides = [1, 1, 1]} : vector<16x16x192xf32> to vector<16x12x16xf32>
    %49 = arith.addf %47, %48 : vector<16x12x16xf32>
    %50 = vector.extract_strided_slice %14 {offsets = [2, 0], sizes = [1, 16], strides = [1, 1]} : vector<3x16xf32> to vector<1x16xf32>
    %51 = vector.shape_cast %50 : vector<1x16xf32> to vector<1x1x16xf32>
    %52 = vector.broadcast %51 : vector<1x1x16xf32> to vector<16x12x16xf32>
    %53 = arith.addf %49, %52 : vector<16x12x16xf32>
    %cst_14 = arith.constant 0.000000e+00 : f32
    %54 = vector.broadcast %cst_14 : f32 to vector<16x12x16xf32>
    %55 = arith.maximumf %53, %54 : vector<16x12x16xf32>
    %cst_15 = arith.constant dense<0xFF800000> : vector<16x16xf32>
    %56 = vector.multi_reduction <maximumf>, %55, %cst_15 [1] : vector<16x12x16xf32> to vector<16x16xf32>
    %57 = tpu.concatenate %26, %40, %56 in 1 : vector<16x16xf32>, vector<16x16xf32>, vector<16x16xf32> -> vector<16x48xf32>
    %c0_16 = arith.constant 0 : index
    %c0_17 = arith.constant 0 : index
    %58 = vector.load %arg5[%c0_16, %c0_17] : memref<48x4xf32, #tpu.memory_space<vmem>>, vector<48x4xf32>
    %cst_18 = arith.constant dense<0.000000e+00> : vector<16x4xf32>
    %59 = tpu.matmul %57, %58, %cst_18 {dimension_numbers = #tpu.dot_dimension_numbers<[1], [0], [0], [1], [0, 0, 1, 1], [], []>} : vector<16x48xf32>, vector<48x4xf32>, vector<16x4xf32> -> vector<16x4xf32>
    %c0_19 = arith.constant 0 : index
    %c0_20 = arith.constant 0 : index
    %60 = vector.load %arg6[%c0_19, %c0_20] : memref<1x4xf32, #tpu.memory_space<vmem>>, vector<1x4xf32>
    %61 = vector.broadcast %60 : vector<1x4xf32> to vector<16x4xf32>
    %62 = arith.addf %59, %61 : vector<16x4xf32>
    %cst_21 = arith.constant dense<0xFF800000> : vector<16xf32>
    %63 = vector.multi_reduction <maximumf>, %62, %cst_21 [1] : vector<16x4xf32> to vector<16xf32>
    %64 = vector.shape_cast %63 : vector<16xf32> to vector<16x1xf32>
    %65 = vector.broadcast %64 : vector<16x1xf32> to vector<16x4xf32>
    %66 = arith.subf %62, %65 : vector<16x4xf32>
    %67 = math.exp %66 : vector<16x4xf32>
    %cst_22 = arith.constant dense<0.000000e+00> : vector<16xf32>
    %68 = vector.multi_reduction <add>, %67, %cst_22 [1] : vector<16x4xf32> to vector<16xf32>
    %69 = vector.shape_cast %68 : vector<16xf32> to vector<16x1xf32>
    %70 = tpu.reciprocal %69 {approx = true} : vector<16x1xf32> -> vector<16x1xf32>
    %71 = vector.broadcast %70 : vector<16x1xf32> to vector<16x4xf32>
    %72 = arith.mulf %67, %71 : vector<16x4xf32>
    %cst_23 = arith.constant 0.000000e+00 : f32
    %73 = vector.broadcast %cst_23 : f32 to vector<16x76xf32>
    %74 = tpu.concatenate %72, %57, %73 in 1 : vector<16x4xf32>, vector<16x48xf32>, vector<16x76xf32> -> vector<16x128xf32>
    %c0_24 = arith.constant 0 : index
    %c0_25 = arith.constant 0 : index
    %75 = vector.load %arg7[%c0_24, %c0_25] : memref<16x128xf32, #tpu.memory_space<vmem>>, vector<16x128xf32>
    tpu.vector_store %arg7[%c0_24, %c0_25], %74 {strides = array<i32>} : memref<16x128xf32, #tpu.memory_space<vmem>>, vector<16x128xf32>,
    return
  }
  func.func @transform_0(%arg0: i32) -> (i32, i32) {
    %c0_i32 = arith.constant 0 : i32
    %c0_i32_0 = arith.constant 0 : i32
    return %arg0, %c0_i32 : i32, i32
  }
  func.func @transform_1(%arg0: i32) -> (i32, i32) {
    %c0_i32 = arith.constant 0 : i32
    %c0_i32_0 = arith.constant 0 : i32
    %c0_i32_1 = arith.constant 0 : i32
    return %c0_i32, %c0_i32_0 : i32, i32
  }
  func.func @transform_2(%arg0: i32) -> (i32, i32) {
    %c0_i32 = arith.constant 0 : i32
    %c0_i32_0 = arith.constant 0 : i32
    %c0_i32_1 = arith.constant 0 : i32
    return %c0_i32, %c0_i32_0 : i32, i32
  }
  func.func @transform_3(%arg0: i32) -> (i32, i32) {
    %c0_i32 = arith.constant 0 : i32
    %c0_i32_0 = arith.constant 0 : i32
    %c0_i32_1 = arith.constant 0 : i32
    return %c0_i32, %c0_i32_0 : i32, i32
  }
  func.func @transform_4(%arg0: i32) -> (i32, i32) {
    %c0_i32 = arith.constant 0 : i32
    %c0_i32_0 = arith.constant 0 : i32
    %c0_i32_1 = arith.constant 0 : i32
    return %c0_i32, %c0_i32_0 : i32, i32
  }
  func.func @transform_5(%arg0: i32) -> (i32, i32) {
    %c0_i32 = arith.constant 0 : i32
    %c0_i32_0 = arith.constant 0 : i32
    %c0_i32_1 = arith.constant 0 : i32
    return %c0_i32, %c0_i32_0 : i32, i32
  }
  func.func @transform_6(%arg0: i32) -> (i32, i32) {
    %c0_i32 = arith.constant 0 : i32
    %c0_i32_0 = arith.constant 0 : i32
    return %arg0, %c0_i32 : i32, i32
  }
}

</mosaic_0001>

<llo_original>
// kernel: cnn_forward.1
$region0: #{cnn_forward.1}
  #allocation0 [shape = 'u32[]', space=smem, size = 0x4, offset = 0x4, fixed_abs, tag = 'smem constant byte address 0x4 - core index']
  #allocation1 [shape = 'u32[144,128]{1,0:T(1,128)}', space=vmem, size = 0x12000, scoped, tag = 'internal scratch']
  %s0 = inlined_call_operand.vmem [shape: s32[32,16], index: 0, kind: input, shape index: {}]
  %s1 = inlined_call_operand.vmem [shape: f32[128,32], index: 1, kind: input, shape index: {}]
  %s2 = inlined_call_operand.vmem [shape: f32[32,192], index: 2, kind: input, shape index: {}]
  %s3 = inlined_call_operand.vmem [shape: f32[3,16], index: 3, kind: input, shape index: {}]
  %s4 = inlined_call_operand.vmem [shape: f32[48,4], index: 4, kind: input, shape index: {}]
  %s5 = inlined_call_operand.vmem [shape: f32[1,4], index: 5, kind: input, shape index: {}]
  %s6 = inlined_call_operand.vmem [shape: f32[32,128], index: 6, kind: output, shape index: {}]
  %s7 = sld [smem:[#allocation0]]
  $region57: #{cnn_forward.1} parent=0
    _
  %s9 = ssub.s32 1, %s7
  %s10 = scalar_select 0, %s9, %s7
  loop: start=0, step=1, limit=4
  $region2: #{cnn_forward.1} parent=0 // loop_pre_header
    _
  $region3: #{cnn_forward.1} parent=0 // loop_header
    %s12 = sphi 0, %s16
    %p13 = scmp.ge.s32.totalorder %s12, 4
    %s22 = sphi 0, %s24
    %s25 = sphi 0, %s22
    %s26 = sphi 0, %s25
    %s42 = sphi 0, %s26
    %s46 = sphi 0, %s46
    %s48 = sphi 0, %s46
    %s49 = sphi 0, %s48
    %s63 = sphi 0, %s49
    %s67 = sphi 0, %s67
    %s69 = sphi 0, %s67
    %s70 = sphi 0, %s69
    %s84 = sphi 0, %s70
    %s88 = sphi 0, %s88
    %s90 = sphi 0, %s88
    %s91 = sphi 0, %s90
    %s105 = sphi 0, %s91
    %s109 = sphi 0, %s109
    %s111 = sphi 0, %s109
    %s112 = sphi 0, %s111
    %s126 = sphi 0, %s112
    %s130 = sphi 0, %s130
    %s132 = sphi 0, %s130
    %s133 = sphi 0, %s132
    %s147 = sphi 0, %s133
    %s153 = sphi 0, %s155
    %s156 = sphi 0, %s153
    %s157 = sphi 0, %s156
    %s173 = sphi 0, %s157
  $region4: #{cnn_forward.1} parent=0 // loop_header_branch
    %15 = sbr.rel (%p13) target = $region8
  $region5: #{cnn_forward.1} parent=0 // loop_body
    %s17 = ssub.s32 %s12, 1
    %s18 = ssub.s32 %s12, 2
    %s19 = sadd.s32 %s12, 1
    %s20 = ssub.s32 %s12, %s19
    %p21 = scmp.eq.s32.totalorder %s20, 0
    %s23 = sadd.s32 %s22, 1
    %s24 = scalar_select %p21, %s22, %s23
    %p27 = pneg %p21
    %p28 = scmp.eq.s32.totalorder %s12, 1
    %p29 = por %p27, %p28
    %p30 = scmp.ne.s32.totalorder %s22, %s25
    %p31 = scmp.eq.s32.totalorder %s12, 0
    %p32 = por %p30, %p31
    %p33 = scmp.ne.s32.totalorder %s22, %s25
    %p34 = scmp.eq.s32.totalorder %s17, 1
    %p35 = por %p33, %p34
    %p36 = scmp.ne.s32.totalorder %s25, %s26
    %p37 = scmp.eq.s32.totalorder %s17, 0
    %p38 = por %p36, %p37
    %p39 = scmp.ne.s32.totalorder %s25, %s26
    %p40 = scmp.eq.s32.totalorder %s18, 1
    %p41 = por %p39, %p40
    %p43 = scmp.ne.s32.totalorder %s26, %s42
    %p44 = scmp.eq.s32.totalorder %s18, 0
    %p45 = por %p43, %p44
    %s47 = sadd.s32 %s46, 1
    %p50 = scmp.eq.s32.totalorder %s12, 1
    %p51 = scmp.ne.s32.totalorder %s46, %s48
    %p52 = scmp.eq.s32.totalorder %s12, 0
    %p53 = por %p51, %p52
    %p54 = scmp.ne.s32.totalorder %s46, %s48
    %p55 = scmp.eq.s32.totalorder %s17, 1
    %p56 = por %p54, %p55
    %p57 = scmp.ne.s32.totalorder %s48, %s49
    %p58 = scmp.eq.s32.totalorder %s17, 0
    %p59 = por %p57, %p58
    %p60 = scmp.ne.s32.totalorder %s48, %s49
    %p61 = scmp.eq.s32.totalorder %s18, 1
    %p62 = por %p60, %p61
    %p64 = scmp.ne.s32.totalorder %s49, %s63
    %p65 = scmp.eq.s32.totalorder %s18, 0
    %p66 = por %p64, %p65
    %s68 = sadd.s32 %s67, 1
    %p71 = scmp.eq.s32.totalorder %s12, 1
    %p72 = scmp.ne.s32.totalorder %s67, %s69
    %p73 = scmp.eq.s32.totalorder %s12, 0
    %p74 = por %p72, %p73
    %p75 = scmp.ne.s32.totalorder %s67, %s69
    %p76 = scmp.eq.s32.totalorder %s17, 1
    %p77 = por %p75, %p76
    %p78 = scmp.ne.s32.totalorder %s69, %s70
    %p79 = scmp.eq.s32.totalorder %s17, 0
    %p80 = por %p78, %p79
    %p81 = scmp.ne.s32.totalorder %s69, %s70
    %p82 = scmp.eq.s32.totalorder %s18, 1
    %p83 = por %p81, %p82
    %p85 = scmp.ne.s32.totalorder %s70, %s84
    %p86 = scmp.eq.s32.totalorder %s18, 0
    %p87 = por %p85, %p86
    %s89 = sadd.s32 %s88, 1
    %p92 = scmp.eq.s32.totalorder %s12, 1
    %p93 = scmp.ne.s32.totalorder %s88, %s90
    %p94 = scmp.eq.s32.totalorder %s12, 0
    %p95 = por %p93, %p94
    %p96 = scmp.ne.s32.totalorder %s88, %s90
    %p97 = scmp.eq.s32.totalorder %s17, 1
    %p98 = por %p96, %p97
    %p99 = scmp.ne.s32.totalorder %s90, %s91
    %p100 = scmp.eq.s32.totalorder %s17, 0
    %p101 = por %p99, %p100
    %p102 = scmp.ne.s32.totalorder %s90, %s91
    %p103 = scmp.eq.s32.totalorder %s18, 1
    %p104 = por %p102, %p103
    %p106 = scmp.ne.s32.totalorder %s91, %s105
    %p107 = scmp.eq.s32.totalorder %s18, 0
    %p108 = por %p106, %p107
    %s110 = sadd.s32 %s109, 1
    %p113 = scmp.eq.s32.totalorder %s12, 1
    %p114 = scmp.ne.s32.totalorder %s109, %s111
    %p115 = scmp.eq.s32.totalorder %s12, 0
    %p116 = por %p114, %p115
    %p117 = scmp.ne.s32.totalorder %s109, %s111
    %p118 = scmp.eq.s32.totalorder %s17, 1
    %p119 = por %p117, %p118
    %p120 = scmp.ne.s32.totalorder %s111, %s112
    %p121 = scmp.eq.s32.totalorder %s17, 0
    %p122 = por %p120, %p121
    %p123 = scmp.ne.s32.totalorder %s111, %s112
    %p124 = scmp.eq.s32.totalorder %s18, 1
    %p125 = por %p123, %p124
    %p127 = scmp.ne.s32.totalorder %s112, %s126
    %p128 = scmp.eq.s32.totalorder %s18, 0
    %p129 = por %p127, %p128
    %s131 = sadd.s32 %s130, 1
    %p134 = scmp.eq.s32.totalorder %s12, 1
    %p135 = scmp.ne.s32.totalorder %s130, %s132
    %p136 = scmp.eq.s32.totalorder %s12, 0
    %p137 = por %p135, %p136
    %p138 = scmp.ne.s32.totalorder %s130, %s132
    %p139 = scmp.eq.s32.totalorder %s17, 1
    %p140 = por %p138, %p139
    %p141 = scmp.ne.s32.totalorder %s132, %s133
    %p142 = scmp.eq.s32.totalorder %s17, 0
    %p143 = por %p141, %p142
    %p144 = scmp.ne.s32.totalorder %s132, %s133
    %p145 = scmp.eq.s32.totalorder %s18, 1
    %p146 = por %p144, %p145
    %p148 = scmp.ne.s32.totalorder %s133, %s147
    %p149 = scmp.eq.s32.totalorder %s18, 0
    %p150 = por %p148, %p149
    %s151 = ssub.s32 %s12, %s19
    %p152 = scmp.eq.s32.totalorder %s151, 0
    %s154 = sadd.s32 %s153, 1
    %s155 = scalar_select %p152, %s153, %s154
    %p158 = pneg %p152
    %p159 = scmp.eq.s32.totalorder %s12, 1
    %p160 = por %p158, %p159
    %p161 = scmp.ne.s32.totalorder %s153, %s156
    %p162 = scmp.eq.s32.totalorder %s12, 0
    %p163 = por %p161, %p162
    %p164 = scmp.ne.s32.totalorder %s153, %s156
    %p165 = scmp.eq.s32.totalorder %s17, 1
    %p166 = por %p164, %p165
    %p167 = scmp.ne.s32.totalorder %s156, %s157
    %p168 = scmp.eq.s32.totalorder %s17, 0
    %p169 = por %p167, %p168
    %p170 = scmp.ne.s32.totalorder %s156, %s157
    %p171 = scmp.eq.s32.totalorder %s18, 1
    %p172 = por %p170, %p171
    %p174 = scmp.ne.s32.totalorder %s157, %s173
    %p175 = scmp.eq.s32.totalorder %s18, 0
    %p176 = por %p174, %p175
    %p177 = scmp.le.s32.totalorder 1, %s12
    %p178 = scmp.lt.s32.totalorder %s12, 3
    %p179 = pnand %p177, %p178
    %p180 = pneg %p179
    // Predicated region
    $region9: #{cnn_forward.1} parent=5 // pred_check
      _
    $region10: #{cnn_forward.1} parent=5 // pred_check_branch
      %182 = sbr.rel (%p179) target = $region12
    $region11: #{cnn_forward.1} parent=5 // pred_region
      %s183 = ssub.s32 %s12, 1
      // Predicated region
      $region13: #{cnn_forward.1} parent=11 // pred_check
        %p184 = pneg %p59
      $region14: #{cnn_forward.1} parent=11 // pred_check_branch
        %186 = sbr.rel (%p184) target = $region16
      $region15: #{cnn_forward.1} parent=11 // pred_region
        _
      $region16: #{cnn_forward.1} parent=11 // pred_fallthru
        _
      // Predicated region
      $region17: #{cnn_forward.1} parent=11 // pred_check
        %p187 = pneg %p80
      $region18: #{cnn_forward.1} parent=11 // pred_check_branch
        %189 = sbr.rel (%p187) target = $region20
      $region19: #{cnn_forward.1} parent=11 // pred_region
        _
      $region20: #{cnn_forward.1} parent=11 // pred_fallthru
        _
      // Predicated region
      $region21: #{cnn_forward.1} parent=11 // pred_check
        %p190 = pneg %p101
      $region22: #{cnn_forward.1} parent=11 // pred_check_branch
        %192 = sbr.rel (%p190) target = $region24
      $region23: #{cnn_forward.1} parent=11 // pred_region
        _
      $region24: #{cnn_forward.1} parent=11 // pred_fallthru
        _
      // Predicated region
      $region25: #{cnn_forward.1} parent=11 // pred_check
        %p193 = pneg %p122
      $region26: #{cnn_forward.1} parent=11 // pred_check_branch
        %195 = sbr.rel (%p193) target = $region28
      $region27: #{cnn_forward.1} parent=11 // pred_region
        _
      $region28: #{cnn_forward.1} parent=11 // pred_fallthru
        _
      // Predicated region
      $region29: #{cnn_forward.1} parent=11 // pred_check
        %p196 = pneg %p143
      $region30: #{cnn_forward.1} parent=11 // pred_check_branch
        %198 = sbr.rel (%p196) target = $region32
      $region31: #{cnn_forward.1} parent=11 // pred_region
        _
      $region32: #{cnn_forward.1} parent=11 // pred_fallthru
        _
    $region12: #{cnn_forward.1} parent=5 // pred_fallthru
      _
    %p199 = scmp.lt.s32.totalorder %s12, 2
    // Predicated region
    $region33: #{cnn_forward.1} parent=5 // pred_check
      %p200 = pneg %p199
    $region34: #{cnn_forward.1} parent=5 // pred_check_branch
      %202 = sbr.rel (%p200) target = $region36
    $region35: #{cnn_forward.1} parent=5 // pred_region
      // Predicated region
      $region37: #{cnn_forward.1} parent=35 // pred_check
        %p203 = pneg %p32
      $region38: #{cnn_forward.1} parent=35 // pred_check_branch
        %205 = sbr.rel (%p203) target = $region40
      $region39: #{cnn_forward.1} parent=35 // pred_region
        %s206 = smul.u32 2, %s12
        %p207 = scmp.lt.s32.totalorder %s206, 3
        %s208 = scalar_select %p207, %s206, 3
        %s209 = smul.addr %s208, 8
        %s210 = scalar_lea.vmem %s0, %s209
        %s211 = smul.u32 2, %s12
      $region40: #{cnn_forward.1} parent=35 // pred_fallthru
        _
    $region36: #{cnn_forward.1} parent=5 // pred_fallthru
      _
    %p212 = scmp.le.s32.totalorder 1, %s12
    %p213 = scmp.lt.s32.totalorder %s12, 3
    %p214 = pnand %p212, %p213
    %p215 = pneg %p214
    // Predicated region
    $region41: #{cnn_forward.1} parent=5 // pred_check
      _
    $region42: #{cnn_forward.1} parent=5 // pred_check_branch
      %217 = sbr.rel (%p214) target = $region44
    $region43: #{cnn_forward.1} parent=5 // pred_region
      %s218 = ssub.s32 %s12, 1
      %s219 = smul.u32 2, %s17
      %p220 = scmp.lt.s32.totalorder %s219, 3
      %s221 = scalar_select %p220, %s219, 3
      %s222 = smul.addr %s221, 8
      %s223 = scalar_lea.vmem %s0, %s222
      %p224 = pneg %p38
      %p225 = pneg %p35
      %p226 = pneg %p59
      %p227 = pneg %p56
      %p228 = pneg %p80
      %p229 = pneg %p77
      %p230 = pneg %p101
      %p231 = pneg %p98
      %p232 = pneg %p122
      %p233 = pneg %p119
      %p234 = pneg %p143
      %p235 = pneg %p140
      %p236 = pneg %p169
      %p237 = pneg %p166
      %s238 = smul.u32 2, %s17
      %p239 = scmp.lt.s32.totalorder %s238, 3
      %s240 = scalar_select %p239, %s238, 3
      %s241 = smul.addr %s240, 8
      %s242 = scalar_lea.vmem %s6, %s241
      %s243 = smul.u32 2, %s17
      %p244 = scmp.lt.s32.totalorder %s243, 3
      %s245 = scalar_select %p244, %s243, 3
      %s246 = smul.addr %s245, 8
      %s247 = scalar_lea.vmem %s0, %s246
      %s248 = smul.u32 2, %s17
      %s249 = smul.u32 2, %s17
      %p250 = scmp.lt.s32.totalorder %s249, 3
      %s251 = scalar_select %p250, %s249, 3
      %s252 = smul.addr %s251, 8
      %s253 = scalar_lea.vmem %s6, %s252
      %s254 = smul.u32 2, %s17
      %v255 = vld [vmem:[%s247] sm:$0xff]
      %v256 = vld [vmem:[%s247 + $0x8] sm:$0xff]
      %v257 = vlaneseq
      %v258 = vand.u32 %v257, 127
      %v259 = vlaneseq
      %v260 = vshrl.u32 %v259, 7
      %v261 = vsub.s32 0, %v260
      %v262 = vrot.slane %v255, %v261
      %264 = vbcast.lane.b32.xlu0 %v262, 256
      %v265 = vpop.permute.xlu0 %264
      %s267 = sor.u32 256, 8
      %268 = vbcast.lane.b32.xlu0 %v262, %s267
      %v269 = vpop.permute.xlu0 %268
      %v270 = vlaneseq
      %v271 = vshrl.u32 %v270, 7
      %v272 = vsub.s32 1, %v271
      %v273 = vrot.slane %v255, %v272
      %275 = vbcast.lane.b32.xlu0 %v273, 256
      %v276 = vpop.permute.xlu0 %275
      %s278 = sor.u32 256, 8
      %279 = vbcast.lane.b32.xlu0 %v273, %s278
      %v280 = vpop.permute.xlu0 %279
      %v281 = vlaneseq
      %v282 = vshrl.u32 %v281, 7
      %v283 = vsub.s32 2, %v282
      %v284 = vrot.slane %v255, %v283
      %286 = vbcast.lane.b32.xlu0 %v284, 256
      %v287 = vpop.permute.xlu0 %286
      %s289 = sor.u32 256, 8
      %290 = vbcast.lane.b32.xlu0 %v284, %s289
      %v291 = vpop.permute.xlu0 %290
      %v292 = vlaneseq
      %v293 = vshrl.u32 %v292, 7
      %v294 = vsub.s32 3, %v293
      %v295 = vrot.slane %v255, %v294
      %297 = vbcast.lane.b32.xlu0 %v295, 256
      %v298 = vpop.permute.xlu0 %297
      %s300 = sor.u32 256, 8
      %301 = vbcast.lane.b32.xlu0 %v295, %s300
      %v302 = vpop.permute.xlu0 %301
      %v303 = vlaneseq
      %v304 = vshrl.u32 %v303, 7
      %v305 = vsub.s32 4, %v304
      %v306 = vrot.slane %v255, %v305
      %308 = vbcast.lane.b32.xlu0 %v306, 256
      %v309 = vpop.permute.xlu0 %308
      %s311 = sor.u32 256, 8
      %312 = vbcast.lane.b32.xlu0 %v306, %s311
      %v313 = vpop.permute.xlu0 %312
      %v314 = vlaneseq
      %v315 = vshrl.u32 %v314, 7
      %v316 = vsub.s32 5, %v315
      %v317 = vrot.slane %v255, %v316
      %319 = vbcast.lane.b32.xlu0 %v317, 256
      %v320 = vpop.permute.xlu0 %319
      %s322 = sor.u32 256, 8
      %323 = vbcast.lane.b32.xlu0 %v317, %s322
      %v324 = vpop.permute.xlu0 %323
      %v325 = vlaneseq
      %v326 = vshrl.u32 %v325, 7
      %v327 = vsub.s32 6, %v326
      %v328 = vrot.slane %v255, %v327
      %330 = vbcast.lane.b32.xlu0 %v328, 256
      %v331 = vpop.permute.xlu0 %330
      %s333 = sor.u32 256, 8
      %334 = vbcast.lane.b32.xlu0 %v328, %s333
      %v335 = vpop.permute.xlu0 %334
      %v336 = vlaneseq
      %v337 = vshrl.u32 %v336, 7
      %v338 = vsub.s32 7, %v337
      %v339 = vrot.slane %v255, %v338
      %341 = vbcast.lane.b32.xlu0 %v339, 256
      %v342 = vpop.permute.xlu0 %341
      %s344 = sor.u32 256, 8
      %345 = vbcast.lane.b32.xlu0 %v339, %s344
      %v346 = vpop.permute.xlu0 %345
      %v347 = vlaneseq
      %v348 = vshrl.u32 %v347, 7
      %v349 = vsub.s32 0, %v348
      %v350 = vrot.slane %v256, %v349
      %352 = vbcast.lane.b32.xlu0 %v350, 256
      %v353 = vpop.permute.xlu0 %352
      %s355 = sor.u32 256, 8
      %356 = vbcast.lane.b32.xlu0 %v350, %s355
      %v357 = vpop.permute.xlu0 %356
      %v358 = vlaneseq
      %v359 = vshrl.u32 %v358, 7
      %v360 = vsub.s32 1, %v359
      %v361 = vrot.slane %v256, %v360
      %363 = vbcast.lane.b32.xlu0 %v361, 256
      %v364 = vpop.permute.xlu0 %363
      %s366 = sor.u32 256, 8
      %367 = vbcast.lane.b32.xlu0 %v361, %s366
      %v368 = vpop.permute.xlu0 %367
      %v369 = vlaneseq
      %v370 = vshrl.u32 %v369, 7
      %v371 = vsub.s32 2, %v370
      %v372 = vrot.slane %v256, %v371
      %374 = vbcast.lane.b32.xlu0 %v372, 256
      %v375 = vpop.permute.xlu0 %374
      %s377 = sor.u32 256, 8
      %378 = vbcast.lane.b32.xlu0 %v372, %s377
      %v379 = vpop.permute.xlu0 %378
      %v380 = vlaneseq
      %v381 = vshrl.u32 %v380, 7
      %v382 = vsub.s32 3, %v381
      %v383 = vrot.slane %v256, %v382
      %385 = vbcast.lane.b32.xlu0 %v383, 256
      %v386 = vpop.permute.xlu0 %385
      %s388 = sor.u32 256, 8
      %389 = vbcast.lane.b32.xlu0 %v383, %s388
      %v390 = vpop.permute.xlu0 %389
      %v391 = vlaneseq
      %v392 = vshrl.u32 %v391, 7
      %v393 = vsub.s32 4, %v392
      %v394 = vrot.slane %v256, %v393
      %396 = vbcast.lane.b32.xlu0 %v394, 256
      %v397 = vpop.permute.xlu0 %396
      %s399 = sor.u32 256, 8
      %400 = vbcast.lane.b32.xlu0 %v394, %s399
      %v401 = vpop.permute.xlu0 %400
      %v402 = vlaneseq
      %v403 = vshrl.u32 %v402, 7
      %v404 = vsub.s32 5, %v403
      %v405 = vrot.slane %v256, %v404
      %407 = vbcast.lane.b32.xlu0 %v405, 256
      %v408 = vpop.permute.xlu0 %407
      %s410 = sor.u32 256, 8
      %411 = vbcast.lane.b32.xlu0 %v405, %s410
      %v412 = vpop.permute.xlu0 %411
      %v413 = vlaneseq
      %v414 = vshrl.u32 %v413, 7
      %v415 = vsub.s32 6, %v414
      %v416 = vrot.slane %v256, %v415
      %418 = vbcast.lane.b32.xlu0 %v416, 256
      %v419 = vpop.permute.xlu0 %418
      %s421 = sor.u32 256, 8
      %422 = vbcast.lane.b32.xlu0 %v416, %s421
      %v423 = vpop.permute.xlu0 %422
      %v424 = vlaneseq
      %v425 = vshrl.u32 %v424, 7
      %v426 = vsub.s32 7, %v425
      %v427 = vrot.slane %v256, %v426
      %429 = vbcast.lane.b32.xlu0 %v427, 256
      %v430 = vpop.permute.xlu0 %429
      %s432 = sor.u32 256, 8
      %433 = vbcast.lane.b32.xlu0 %v427, %s432
      %v434 = vpop.permute.xlu0 %433
      %vm435 = vcmp.eq.s32.totalorder %v265, %v258
      %vm436 = vcmp.eq.s32.totalorder %v269, %v258
      %vm437 = vcmp.eq.s32.totalorder %v276, %v258
      %vm438 = vcmp.eq.s32.totalorder %v280, %v258
      %vm439 = vcmp.eq.s32.totalorder %v287, %v258
      %vm440 = vcmp.eq.s32.totalorder %v291, %v258
      %vm441 = vcmp.eq.s32.totalorder %v298, %v258
      %vm442 = vcmp.eq.s32.totalorder %v302, %v258
      %vm443 = vcmp.eq.s32.totalorder %v309, %v258
      %vm444 = vcmp.eq.s32.totalorder %v313, %v258
      %vm445 = vcmp.eq.s32.totalorder %v320, %v258
      %vm446 = vcmp.eq.s32.totalorder %v324, %v258
      %vm447 = vcmp.eq.s32.totalorder %v331, %v258
      %vm448 = vcmp.eq.s32.totalorder %v335, %v258
      %vm449 = vcmp.eq.s32.totalorder %v342, %v258
      %vm450 = vcmp.eq.s32.totalorder %v346, %v258
      %vm451 = vcmp.eq.s32.totalorder %v353, %v258
      %vm452 = vcmp.eq.s32.totalorder %v357, %v258
      %vm453 = vcmp.eq.s32.totalorder %v364, %v258
      %vm454 = vcmp.eq.s32.totalorder %v368, %v258
      %vm455 = vcmp.eq.s32.totalorder %v375, %v258
      %vm456 = vcmp.eq.s32.totalorder %v379, %v258
      %vm457 = vcmp.eq.s32.totalorder %v386, %v258
      %vm458 = vcmp.eq.s32.totalorder %v390, %v258
      %vm459 = vcmp.eq.s32.totalorder %v397, %v258
      %vm460 = vcmp.eq.s32.totalorder %v401, %v258
      %vm461 = vcmp.eq.s32.totalorder %v408, %v258
      %vm462 = vcmp.eq.s32.totalorder %v412, %v258
      %vm463 = vcmp.eq.s32.totalorder %v419, %v258
      %vm464 = vcmp.eq.s32.totalorder %v423, %v258
      %vm465 = vcmp.eq.s32.totalorder %v430, %v258
      %vm466 = vcmp.eq.s32.totalorder %v434, %v258
      %v467 = vsel %vm435, 1.0, 0.0
      %v468 = vsel %vm436, 1.0, 0.0
      %v469 = vsel %vm437, 1.0, 0.0
      %v470 = vsel %vm438, 1.0, 0.0
      %v471 = vsel %vm439, 1.0, 0.0
      %v472 = vsel %vm440, 1.0, 0.0
      %v473 = vsel %vm441, 1.0, 0.0
      %v474 = vsel %vm442, 1.0, 0.0
      %v475 = vsel %vm443, 1.0, 0.0
      %v476 = vsel %vm444, 1.0, 0.0
      %v477 = vsel %vm445, 1.0, 0.0
      %v478 = vsel %vm446, 1.0, 0.0
      %v479 = vsel %vm447, 1.0, 0.0
      %v480 = vsel %vm448, 1.0, 0.0
      %v481 = vsel %vm449, 1.0, 0.0
      %v482 = vsel %vm450, 1.0, 0.0
      %v483 = vsel %vm451, 1.0, 0.0
      %v484 = vsel %vm452, 1.0, 0.0
      %v485 = vsel %vm453, 1.0, 0.0
      %v486 = vsel %vm454, 1.0, 0.0
      %v487 = vsel %vm455, 1.0, 0.0
      %v488 = vsel %vm456, 1.0, 0.0
      %v489 = vsel %vm457, 1.0, 0.0
      %v490 = vsel %vm458, 1.0, 0.0
      %v491 = vsel %vm459, 1.0, 0.0
      %v492 = vsel %vm460, 1.0, 0.0
      %v493 = vsel %vm461, 1.0, 0.0
      %v494 = vsel %vm462, 1.0, 0.0
      %v495 = vsel %vm463, 1.0, 0.0
      %v496 = vsel %vm464, 1.0, 0.0
      %v497 = vsel %vm465, 1.0, 0.0
      %v498 = vsel %vm466, 1.0, 0.0
      %v499 = vld [vmem:[%s1] sm:$0xff]
      %v500 = vld [vmem:[%s1 + $0x8] sm:$0xff]
      %v501 = vld [vmem:[%s1 + $0x10] sm:$0xff]
      %v502 = vld [vmem:[%s1 + $0x18] sm:$0xff]
      %v503 = vld [vmem:[%s1 + $0x20] sm:$0xff]
      %v504 = vld [vmem:[%s1 + $0x28] sm:$0xff]
      %v505 = vld [vmem:[%s1 + $0x30] sm:$0xff]
      %v506 = vld [vmem:[%s1 + $0x38] sm:$0xff]
      %v507 = vld [vmem:[%s1 + $0x40] sm:$0xff]
      %v508 = vld [vmem:[%s1 + $0x48] sm:$0xff]
      %v509 = vld [vmem:[%s1 + $0x50] sm:$0xff]
      %v510 = vld [vmem:[%s1 + $0x58] sm:$0xff]
      %v511 = vld [vmem:[%s1 + $0x60] sm:$0xff]
      %v512 = vld [vmem:[%s1 + $0x68] sm:$0xff]
      %v513 = vld [vmem:[%s1 + $0x70] sm:$0xff]
      %v514 = vld [vmem:[%s1 + $0x78] sm:$0xff]
      %515 = vmatprep.subr.mxu0 0.0
      %516 = vmatpush1.msra.mxu0 %v499
      %517 = vmatprep.subr.mxu0 0.0
      %518 = vmatpush1.msra.mxu0 %v500
      %519 = vmatprep.subr.mxu0 0.0
      %520 = vmatpush1.msra.mxu0 %v501
      %521 = vmatprep.subr.mxu0 0.0
      %522 = vmatpush1.msra.mxu0 %v502
      %523 = vmatprep.subr.mxu0 0.0
      %524 = vmatpush1.msra.mxu0 %v503
      %525 = vmatprep.subr.mxu0 0.0
      %526 = vmatpush1.msra.mxu0 %v504
      %527 = vmatprep.subr.mxu0 0.0
      %528 = vmatpush1.msra.mxu0 %v505
      %529 = vmatprep.subr.mxu0 0.0
      %530 = vmatpush1.msra.mxu0 %v506
      %531 = vmatprep.subr.mxu0 0.0
      %532 = vmatpush1.msra.mxu0 %v507
      %533 = vmatprep.subr.mxu0 0.0
      %534 = vmatpush1.msra.mxu0 %v508
      %535 = vmatprep.subr.mxu0 0.0
      %536 = vmatpush1.msra.mxu0 %v509
      %537 = vmatprep.subr.mxu0 0.0
      %538 = vmatpush1.msra.mxu0 %v510
      %539 = vmatprep.subr.mxu0 0.0
      %540 = vmatpush1.msra.mxu0 %v511
      %541 = vmatprep.subr.mxu0 0.0
      %542 = vmatpush1.msra.mxu0 %v512
      %543 = vmatprep.subr.mxu0 0.0
      %544 = vmatpush1.msra.mxu0 %v513
      %545 = vmatprep.subr.mxu0 0.0
      %546 = vmatpush1.msra.mxu0 %v514
      %547 = vmatprep.subr.mxu0 0.0
      %548 = vmatpush1.msra.mxu0 0.0
      %549 = vmatprep.subr.mxu0 0.0
      %550 = vmatpush1.msra.mxu0 0.0
      %551 = vmatprep.subr.mxu0 0.0
      %552 = vmatpush1.msra.mxu0 0.0
      %553 = vmatprep.subr.mxu0 0.0
      %554 = vmatpush1.msra.mxu0 0.0
      %555 = vmatprep.subr.mxu0 0.0
      %556 = vmatpush1.msra.mxu0 0.0
      %557 = vmatprep.subr.mxu0 0.0
      %558 = vmatpush1.msra.mxu0 0.0
      %559 = vmatprep.subr.mxu0 0.0
      %560 = vmatpush1.msra.mxu0 0.0
      %561 = vmatprep.subr.mxu0 0.0
      %562 = vmatpush1.msra.mxu0 0.0
      %563 = vmatprep.subr.mxu0 0.0
      %564 = vmatpush1.msra.mxu0 0.0
      %565 = vmatprep.subr.mxu0 0.0
      %566 = vmatpush1.msra.mxu0 0.0
      %567 = vmatprep.subr.mxu0 0.0
      %568 = vmatpush1.msra.mxu0 0.0
      %569 = vmatprep.subr.mxu0 0.0
      %570 = vmatpush1.msra.mxu0 0.0
      %571 = vmatprep.subr.mxu0 0.0
      %572 = vmatpush1.msra.mxu0 0.0
      %573 = vmatprep.subr.mxu0 0.0
      %574 = vmatpush1.msra.mxu0 0.0
      %575 = vmatprep.subr.mxu0 0.0
      %576 = vmatpush1.msra.mxu0 0.0
      %577 = vmatprep.subr.mxu0 0.0
      %578 = vmatpush1.msra.mxu0 0.0
      %579 = vmatprep.mubr.f32.mxu0 0.0
      %580 = vmatmul.mubr.f32.gmra.mrb[0].mxu0 %v467
      %v581 = vpop.f32.mrb[0].mxu0
      %v582 = vadd.f32 0.0, %v581
      %v583 = vpop.f32.mrb[0].mxu0
      %584 = vmatprep.mubr.f32.mxu0 0.0
      %585 = vmatmul.mubr.f32.gmra.mrb[0].mxu0 %v468
      %v586 = vpop.f32.mrb[0].mxu0
      %v587 = vadd.f32 0.0, %v586
      %v588 = vpop.f32.mrb[0].mxu0
      %589 = vmatprep.mubr.f32.mxu0 0.0
      %590 = vmatmul.mubr.f32.gmra.mrb[0].mxu0 %v469
      %v591 = vpop.f32.mrb[0].mxu0
      %v592 = vadd.f32 0.0, %v591
      %v593 = vpop.f32.mrb[0].mxu0
      %594 = vmatprep.mubr.f32.mxu0 0.0
      %595 = vmatmul.mubr.f32.gmra.mrb[0].mxu0 %v470
      %v596 = vpop.f32.mrb[0].mxu0
      %v597 = vadd.f32 0.0, %v596
      %v598 = vpop.f32.mrb[0].mxu0
      %599 = vmatprep.mubr.f32.mxu0 0.0
      %600 = vmatmul.mubr.f32.gmra.mrb[0].mxu0 %v471
      %v601 = vpop.f32.mrb[0].mxu0
      %v602 = vadd.f32 0.0, %v601
      %v603 = vpop.f32.mrb[0].mxu0
      %604 = vmatprep.mubr.f32.mxu0 0.0
      %605 = vmatmul.mubr.f32.gmra.mrb[0].mxu0 %v472
      %v606 = vpop.f32.mrb[0].mxu0
      %v607 = vadd.f32 0.0, %v606
      %v608 = vpop.f32.mrb[0].mxu0
      %609 = vmatprep.mubr.f32.mxu0 0.0
      %610 = vmatmul.mubr.f32.gmra.mrb[0].mxu0 %v473
      %v611 = vpop.f32.mrb[0].mxu0
      %v612 = vadd.f32 0.0, %v611
      %v613 = vpop.f32.mrb[0].mxu0
      %614 = vmatprep.mubr.f32.mxu0 0.0
      %615 = vmatmul.mubr.f32.gmra.mrb[0].mxu0 %v474
      %v616 = vpop.f32.mrb[0].mxu0
      %v617 = vadd.f32 0.0, %v616
      %v618 = vpop.f32.mrb[0].mxu0
      %619 = vmatprep.mubr.f32.mxu0 0.0
      %620 = vmatmul.mubr.f32.gmra.mrb[0].mxu0 %v475
      %v621 = vpop.f32.mrb[0].mxu0
      %v622 = vadd.f32 0.0, %v621
      %v623 = vpop.f32.mrb[0].mxu0
      %624 = vmatprep.mubr.f32.mxu0 0.0
      %625 = vmatmul.mubr.f32.gmra.mrb[0].mxu0 %v476
      %v626 = vpop.f32.mrb[0].mxu0
      %v627 = vadd.f32 0.0, %v626
      %v628 = vpop.f32.mrb[0].mxu0
      %629 = vmatprep.mubr.f32.mxu0 0.0
      %630 = vmatmul.mubr.f32.gmra.mrb[0].mxu0 %v477
      %v631 = vpop.f32.mrb[0].mxu0
      %v632 = vadd.f32 0.0, %v631
      %v633 = vpop.f32.mrb[0].mxu0
      %634 = vmatprep.mubr.f32.mxu0 0.0
      %635 = vmatmul.mubr.f32.gmra.mrb[0].mxu0 %v478
      %v636 = vpop.f32.mrb[0].mxu0
      %v637 = vadd.f32 0.0, %v636
      %v638 = vpop.f32.mrb[0].mxu0
      %639 = vmatprep.mubr.f32.mxu0 0.0
      %640 = vmatmul.mubr.f32.gmra.mrb[0].mxu0 %v479
      %v641 = vpop.f32.mrb[0].mxu0
      %v642 = vadd.f32 0.0, %v641
      %v643 = vpop.f32.mrb[0].mxu0
      %644 = vmatprep.mubr.f32.mxu0 0.0
      %645 = vmatmul.mubr.f32.gmra.mrb[0].mxu0 %v480
      %v646 = vpop.f32.mrb[0].mxu0
      %v647 = vadd.f32 0.0, %v646
      %v648 = vpop.f32.mrb[0].mxu0
      %649 = vmatprep.mubr.f32.mxu0 0.0
      %650 = vmatmul.mubr.f32.gmra.mrb[0].mxu0 %v481
      %v651 = vpop.f32.mrb[0].mxu0
      %v652 = vadd.f32 0.0, %v651
      %v653 = vpop.f32.mrb[0].mxu0
      %654 = vmatprep.mubr.f32.mxu0 0.0
      %655 = vmatmul.mubr.f32.gmra.mrb[0].mxu0 %v482
      %v656 = vpop.f32.mrb[0].mxu0
      %v657 = vadd.f32 0.0, %v656
      %v658 = vpop.f32.mrb[0].mxu0
      %659 = vmatprep.mubr.f32.mxu0 0.0
      %660 = vmatmul.mubr.f32.gmra.mrb[0].mxu0 %v483
      %v661 = vpop.f32.mrb[0].mxu0
      %v662 = vadd.f32 0.0, %v661
      %v663 = vpop.f32.mrb[0].mxu0
      %664 = vmatprep.mubr.f32.mxu0 0.0
      %665 = vmatmul.mubr.f32.gmra.mrb[0].mxu0 %v484
      %v666 = vpop.f32.mrb[0].mxu0
      %v667 = vadd.f32 0.0, %v666
      %v668 = vpop.f32.mrb[0].mxu0
      %669 = vmatprep.mubr.f32.mxu0 0.0
      %670 = vmatmul.mubr.f32.gmra.mrb[0].mxu0 %v485
      %v671 = vpop.f32.mrb[0].mxu0
      %v672 = vadd.f32 0.0, %v671
      %v673 = vpop.f32.mrb[0].mxu0
      %674 = vmatprep.mubr.f32.mxu0 0.0
      %675 = vmatmul.mubr.f32.gmra.mrb[0].mxu0 %v486
      %v676 = vpop.f32.mrb[0].mxu0
      %v677 = vadd.f32 0.0, %v676
      %v678 = vpop.f32.mrb[0].mxu0
      %679 = vmatprep.mubr.f32.mxu0 0.0
      %680 = vmatmul.mubr.f32.gmra.mrb[0].mxu0 %v487
      %v681 = vpop.f32.mrb[0].mxu0
      %v682 = vadd.f32 0.0, %v681
      %v683 = vpop.f32.mrb[0].mxu0
      %684 = vmatprep.mubr.f32.mxu0 0.0
      %685 = vmatmul.mubr.f32.gmra.mrb[0].mxu0 %v488
      %v686 = vpop.f32.mrb[0].mxu0
      %v687 = vadd.f32 0.0, %v686
      %v688 = vpop.f32.mrb[0].mxu0
      %689 = vmatprep.mubr.f32.mxu0 0.0
      %690 = vmatmul.mubr.f32.gmra.mrb[0].mxu0 %v489
      %v691 = vpop.f32.mrb[0].mxu0
      %v692 = vadd.f32 0.0, %v691
      %v693 = vpop.f32.mrb[0].mxu0
      %694 = vmatprep.mubr.f32.mxu0 0.0
      %695 = vmatmul.mubr.f32.gmra.mrb[0].mxu0 %v490
      %v696 = vpop.f32.mrb[0].mxu0
      %v697 = vadd.f32 0.0, %v696
      %v698 = vpop.f32.mrb[0].mxu0
      %699 = vmatprep.mubr.f32.mxu0 0.0
      %700 = vmatmul.mubr.f32.gmra.mrb[0].mxu0 %v491
      %v701 = vpop.f32.mrb[0].mxu0
      %v702 = vadd.f32 0.0, %v701
      %v703 = vpop.f32.mrb[0].mxu0
      %704 = vmatprep.mubr.f32.mxu0 0.0
      %705 = vmatmul.mubr.f32.gmra.mrb[0].mxu0 %v492
      %v706 = vpop.f32.mrb[0].mxu0
      %v707 = vadd.f32 0.0, %v706
      %v708 = vpop.f32.mrb[0].mxu0
      %709 = vmatprep.mubr.f32.mxu0 0.0
      %710 = vmatmul.mubr.f32.gmra.mrb[0].mxu0 %v493
      %v711 = vpop.f32.mrb[0].mxu0
      %v712 = vadd.f32 0.0, %v711
      %v713 = vpop.f32.mrb[0].mxu0
      %714 = vmatprep.mubr.f32.mxu0 0.0
      %715 = vmatmul.mubr.f32.gmra.mrb[0].mxu0 %v494
      %v716 = vpop.f32.mrb[0].mxu0
      %v717 = vadd.f32 0.0, %v716
      %v718 = vpop.f32.mrb[0].mxu0
      %719 = vmatprep.mubr.f32.mxu0 0.0
      %720 = vmatmul.mubr.f32.gmra.mrb[0].mxu0 %v495
      %v721 = vpop.f32.mrb[0].mxu0
      %v722 = vadd.f32 0.0, %v721
      %v723 = vpop.f32.mrb[0].mxu0
      %724 = vmatprep.mubr.f32.mxu0 0.0
      %725 = vmatmul.mubr.f32.gmra.mrb[0].mxu0 %v496
      %v726 = vpop.f32.mrb[0].mxu0
      %v727 = vadd.f32 0.0, %v726
      %v728 = vpop.f32.mrb[0].mxu0
      %729 = vmatprep.mubr.f32.mxu0 0.0
      %730 = vmatmul.mubr.f32.gmra.mrb[0].mxu0 %v497
      %v731 = vpop.f32.mrb[0].mxu0
      %v732 = vadd.f32 0.0, %v731
      %v733 = vpop.f32.mrb[0].mxu0
      %734 = vmatprep.mubr.f32.mxu0 0.0
      %735 = vmatmul.mubr.f32.gmra.mrb[0].mxu0 %v498
      %v736 = vpop.f32.mrb[0].mxu0
      %v737 = vadd.f32 0.0, %v736
      %v738 = vpop.f32.mrb[0].mxu0
      %739 = vdwg.mxu0
      %v740 = vld [vmem:[%s2] sm:$0xff]
      %v741 = vld [vmem:[%s2 + $0x8] sm:$0xff]
      %v742 = vld [vmem:[%s2 + $0x10] sm:$0xff]
      %v743 = vld [vmem:[%s2 + $0x18] sm:$0xff]
      %v744 = vld [vmem:[%s2 + $0x20] sm:$0xff]
      %v745 = vld [vmem:[%s2 + $0x28] sm:$0xff]
      %v746 = vld [vmem:[%s2 + $0x30] sm:$0xff]
      %v747 = vld [vmem:[%s2 + $0x38] sm:$0xff]
      %vm748 = vcmask 261120
      %v750 = vsel %vm748, %v582, 0
      %v753 = vsel %vm748, %v587, 0
      %v756 = vsel %vm748, %v592, 0
      %v759 = vsel %vm748, %v597, 0
      %v762 = vsel %vm748, %v602, 0
      %v765 = vsel %vm748, %v607, 0
      %v768 = vsel %vm748, %v612, 0
      %v771 = vsel %vm748, %v617, 0
      %v774 = vsel %vm748, %v622, 0
      %v777 = vsel %vm748, %v627, 0
      %v780 = vsel %vm748, %v632, 0
      %v783 = vsel %vm748, %v637, 0
      %v786 = vsel %vm748, %v642, 0
      %v789 = vsel %vm748, %v647, 0
      %v792 = vsel %vm748, %v652, 0
      %v795 = vsel %vm748, %v657, 0
      %v798 = vsel %vm748, %v662, 0
      %v801 = vsel %vm748, %v667, 0
      %v804 = vsel %vm748, %v672, 0
      %v807 = vsel %vm748, %v677, 0
      %v810 = vsel %vm748, %v682, 0
      %v813 = vsel %vm748, %v687, 0
      %v816 = vsel %vm748, %v692, 0
      %v819 = vsel %vm748, %v697, 0
      %v822 = vsel %vm748, %v702, 0
      %v825 = vsel %vm748, %v707, 0
      %v828 = vsel %vm748, %v712, 0
      %v831 = vsel %vm748, %v717, 0
      %v834 = vsel %vm748, %v722, 0
      %v837 = vsel %vm748, %v727, 0
      %v840 = vsel %vm748, %v732, 0
      %v843 = vsel %vm748, %v737, 0
      %845 = vmatprep.subr.mxu0 %v741
      %846 = vmatpush1.msra.mxu0 %v740
      %847 = vmatprep.subr.mxu0 %v743
      %848 = vmatpush1.msra.mxu0 %v742
      %849 = vmatprep.subr.mxu0 %v745
      %850 = vmatpush1.msra.mxu0 %v744
      %851 = vmatprep.subr.mxu0 %v747
      %852 = vmatpush1.msra.mxu0 %v746
      %853 = vmatprep.subr.mxu0 0.0
      %854 = vmatpush1.msra.mxu0 0.0
      %855 = vmatprep.subr.mxu0 0.0
      %856 = vmatpush1.msra.mxu0 0.0
      %857 = vmatprep.subr.mxu0 0.0
      %858 = vmatpush1.msra.mxu0 0.0
      %859 = vmatprep.subr.mxu0 0.0
      %860 = vmatpush1.msra.mxu0 0.0
      %861 = vmatprep.subr.mxu0 0.0
      %862 = vmatpush1.msra.mxu0 0.0
      %863 = vmatprep.subr.mxu0 0.0
      %864 = vmatpush1.msra.mxu0 0.0
      %865 = vmatprep.subr.mxu0 0.0
      %866 = vmatpush1.msra.mxu0 0.0
      %867 = vmatprep.subr.mxu0 0.0
      %868 = vmatpush1.msra.mxu0 0.0
      %869 = vmatprep.subr.mxu0 0.0
      %870 = vmatpush1.msra.mxu0 0.0
      %871 = vmatprep.subr.mxu0 0.0
      %872 = vmatpush1.msra.mxu0 0.0
      %873 = vmatprep.subr.mxu0 0.0
      %874 = vmatpush1.msra.mxu0 0.0
      %875 = vmatprep.subr.mxu0 0.0
      %876 = vmatpush1.msra.mxu0 0.0
      %877 = vmatprep.subr.mxu0 0.0
      %878 = vmatpush1.msra.mxu0 0.0
      %879 = vmatprep.subr.mxu0 0.0
      %880 = vmatpush1.msra.mxu0 0.0
      %881 = vmatprep.subr.mxu0 0.0
      %882 = vmatpush1.msra.mxu0 0.0
      %883 = vmatprep.subr.mxu0 0.0
      %884 = vmatpush1.msra.mxu0 0.0
      %885 = vmatprep.subr.mxu0 0.0
      %886 = vmatpush1.msra.mxu0 0.0
      %887 = vmatprep.subr.mxu0 0.0
      %888 = vmatpush1.msra.mxu0 0.0
      %889 = vmatprep.subr.mxu0 0.0
      %890 = vmatpush1.msra.mxu0 0.0
      %891 = vmatprep.subr.mxu0 0.0
      %892 = vmatpush1.msra.mxu0 0.0
      %893 = vmatprep.subr.mxu0 0.0
      %894 = vmatpush1.msra.mxu0 0.0
      %895 = vmatprep.subr.mxu0 0.0
      %896 = vmatpush1.msra.mxu0 0.0
      %897 = vmatprep.subr.mxu0 0.0
      %898 = vmatpush1.msra.mxu0 0.0
      %899 = vmatprep.subr.mxu0 0.0
      %900 = vmatpush1.msra.mxu0 0.0
      %901 = vmatprep.subr.mxu0 0.0
      %902 = vmatpush1.msra.mxu0 0.0
      %903 = vmatprep.subr.mxu0 0.0
      %904 = vmatpush1.msra.mxu0 0.0
      %905 = vmatprep.subr.mxu0 0.0
      %906 = vmatpush1.msra.mxu0 0.0
      %907 = vmatprep.subr.mxu0 0.0
      %908 = vmatpush1.msra.mxu0 0.0
      %909 = vmatprep.mubr.f32.mxu0 0.0
      %910 = vmatmul.mubr.f32.gmra.mrb[0].mxu0 %v750
      %v911 = vpop.f32.mrb[0].mxu0
      %v912 = vadd.f32 0.0, %v911
      %v913 = vpop.f32.mrb[0].mxu0
      %v914 = vadd.f32 0.0, %v913
      %915 = vmatprep.mubr.f32.mxu0 0.0
      %916 = vmatmul.mubr.f32.gmra.mrb[0].mxu0 %v753
      %v917 = vpop.f32.mrb[0].mxu0
      %v918 = vadd.f32 0.0, %v917
      %v919 = vpop.f32.mrb[0].mxu0
      %v920 = vadd.f32 0.0, %v919
      %921 = vmatprep.mubr.f32.mxu0 0.0
      %922 = vmatmul.mubr.f32.gmra.mrb[0].mxu0 %v756
      %v923 = vpop.f32.mrb[0].mxu0
      %v924 = vadd.f32 0.0, %v923
      %v925 = vpop.f32.mrb[0].mxu0
      %v926 = vadd.f32 0.0, %v925
      %927 = vmatprep.mubr.f32.mxu0 0.0
      %928 = vmatmul.mubr.f32.gmra.mrb[0].mxu0 %v759
      %v929 = vpop.f32.mrb[0].mxu0
      %v930 = vadd.f32 0.0, %v929
      %v931 = vpop.f32.mrb[0].mxu0
      %v932 = vadd.f32 0.0, %v931
      %933 = vmatprep.mubr.f32.mxu0 0.0
      %934 = vmatmul.mubr.f32.gmra.mrb[0].mxu0 %v762
      %v935 = vpop.f32.mrb[0].mxu0
      %v936 = vadd.f32 0.0, %v935
      %v937 = vpop.f32.mrb[0].mxu0
      %v938 = vadd.f32 0.0, %v937
      %939 = vmatprep.mubr.f32.mxu0 0.0
      %940 = vmatmul.mubr.f32.gmra.mrb[0].mxu0 %v765
      %v941 = vpop.f32.mrb[0].mxu0
      %v942 = vadd.f32 0.0, %v941
      %v943 = vpop.f32.mrb[0].mxu0
      %v944 = vadd.f32 0.0, %v943
      %945 = vmatprep.mubr.f32.mxu0 0.0
      %946 = vmatmul.mubr.f32.gmra.mrb[0].mxu0 %v768
      %v947 = vpop.f32.mrb[0].mxu0
      %v948 = vadd.f32 0.0, %v947
      %v949 = vpop.f32.mrb[0].mxu0
      %v950 = vadd.f32 0.0, %v949
      %951 = vmatprep.mubr.f32.mxu0 0.0
      %952 = vmatmul.mubr.f32.gmra.mrb[0].mxu0 %v771
      %v953 = vpop.f32.mrb[0].mxu0
      %v954 = vadd.f32 0.0, %v953
      %v955 = vpop.f32.mrb[0].mxu0
      %v956 = vadd.f32 0.0, %v955
      %957 = vmatprep.mubr.f32.mxu0 0.0
      %958 = vmatmul.mubr.f32.gmra.mrb[0].mxu0 %v774
      %v959 = vpop.f32.mrb[0].mxu0
      %v960 = vadd.f32 0.0, %v959
      %v961 = vpop.f32.mrb[0].mxu0
      %v962 = vadd.f32 0.0, %v961
      %963 = vmatprep.mubr.f32.mxu0 0.0
      %964 = vmatmul.mubr.f32.gmra.mrb[0].mxu0 %v777
      %v965 = vpop.f32.mrb[0].mxu0
      %v966 = vadd.f32 0.0, %v965
      %v967 = vpop.f32.mrb[0].mxu0
      %v968 = vadd.f32 0.0, %v967
      %969 = vmatprep.mubr.f32.mxu0 0.0
      %970 = vmatmul.mubr.f32.gmra.mrb[0].mxu0 %v780
      %v971 = vpop.f32.mrb[0].mxu0
      %v972 = vadd.f32 0.0, %v971
      %v973 = vpop.f32.mrb[0].mxu0
      %v974 = vadd.f32 0.0, %v973
      %975 = vmatprep.mubr.f32.mxu0 0.0
      %976 = vmatmul.mubr.f32.gmra.mrb[0].mxu0 %v783
      %v977 = vpop.f32.mrb[0].mxu0
      %v978 = vadd.f32 0.0, %v977
      %v979 = vpop.f32.mrb[0].mxu0
      %v980 = vadd.f32 0.0, %v979
      %981 = vmatprep.mubr.f32.mxu0 0.0
      %982 = vmatmul.mubr.f32.gmra.mrb[0].mxu0 %v786
      %v983 = vpop.f32.mrb[0].mxu0
      %v984 = vadd.f32 0.0, %v983
      %v985 = vpop.f32.mrb[0].mxu0
      %v986 = vadd.f32 0.0, %v985
      %987 = vmatprep.mubr.f32.mxu0 0.0
      %988 = vmatmul.mubr.f32.gmra.mrb[0].mxu0 %v789
      %v989 = vpop.f32.mrb[0].mxu0
      %v990 = vadd.f32 0.0, %v989
      %v991 = vpop.f32.mrb[0].mxu0
      %v992 = vadd.f32 0.0, %v991
      %993 = vmatprep.mubr.f32.mxu0 0.0
      %994 = vmatmul.mubr.f32.gmra.mrb[0].mxu0 %v792
      %v995 = vpop.f32.mrb[0].mxu0
      %v996 = vadd.f32 0.0, %v995
      %v997 = vpop.f32.mrb[0].mxu0
      %v998 = vadd.f32 0.0, %v997
      %999 = vmatprep.mubr.f32.mxu0 0.0
      %1000 = vmatmul.mubr.f32.gmra.mrb[0].mxu0 %v795
      %v1001 = vpop.f32.mrb[0].mxu0
      %v1002 = vadd.f32 0.0, %v1001
      %v1003 = vpop.f32.mrb[0].mxu0
      %v1004 = vadd.f32 0.0, %v1003
      %1005 = vmatprep.mubr.f32.mxu0 0.0
      %1006 = vmatmul.mubr.f32.gmra.mrb[0].mxu0 %v798
      %v1007 = vpop.f32.mrb[0].mxu0
      %v1008 = vadd.f32 0.0, %v1007
      %v1009 = vpop.f32.mrb[0].mxu0
      %v1010 = vadd.f32 0.0, %v1009
      %1011 = vmatprep.mubr.f32.mxu0 0.0
      %1012 = vmatmul.mubr.f32.gmra.mrb[0].mxu0 %v801
      %v1013 = vpop.f32.mrb[0].mxu0
      %v1014 = vadd.f32 0.0, %v1013
      %v1015 = vpop.f32.mrb[0].mxu0
      %v1016 = vadd.f32 0.0, %v1015
      %1017 = vmatprep.mubr.f32.mxu0 0.0
      %1018 = vmatmul.mubr.f32.gmra.mrb[0].mxu0 %v804
      %v1019 = vpop.f32.mrb[0].mxu0
      %v1020 = vadd.f32 0.0, %v1019
      %v1021 = vpop.f32.mrb[0].mxu0
      %v1022 = vadd.f32 0.0, %v1021
      %1023 = vmatprep.mubr.f32.mxu0 0.0
      %1024 = vmatmul.mubr.f32.gmra.mrb[0].mxu0 %v807
      %v1025 = vpop.f32.mrb[0].mxu0
      %v1026 = vadd.f32 0.0, %v1025
      %v1027 = vpop.f32.mrb[0].mxu0
      %v1028 = vadd.f32 0.0, %v1027
      %1029 = vmatprep.mubr.f32.mxu0 0.0
      %1030 = vmatmul.mubr.f32.gmra.mrb[0].mxu0 %v810
      %v1031 = vpop.f32.mrb[0].mxu0
      %v1032 = vadd.f32 0.0, %v1031
      %v1033 = vpop.f32.mrb[0].mxu0
      %v1034 = vadd.f32 0.0, %v1033
      %1035 = vmatprep.mubr.f32.mxu0 0.0
      %1036 = vmatmul.mubr.f32.gmra.mrb[0].mxu0 %v813
      %v1037 = vpop.f32.mrb[0].mxu0
      %v1038 = vadd.f32 0.0, %v1037
      %v1039 = vpop.f32.mrb[0].mxu0
      %v1040 = vadd.f32 0.0, %v1039
      %1041 = vmatprep.mubr.f32.mxu0 0.0
      %1042 = vmatmul.mubr.f32.gmra.mrb[0].mxu0 %v816
      %v1043 = vpop.f32.mrb[0].mxu0
      %v1044 = vadd.f32 0.0, %v1043
      %v1045 = vpop.f32.mrb[0].mxu0
      %v1046 = vadd.f32 0.0, %v1045
      %1047 = vmatprep.mubr.f32.mxu0 0.0
      %1048 = vmatmul.mubr.f32.gmra.mrb[0].mxu0 %v819
      %v1049 = vpop.f32.mrb[0].mxu0
      %v1050 = vadd.f32 0.0, %v1049
      %v1051 = vpop.f32.mrb[0].mxu0
      %v1052 = vadd.f32 0.0, %v1051
      %1053 = vmatprep.mubr.f32.mxu0 0.0
      %1054 = vmatmul.mubr.f32.gmra.mrb[0].mxu0 %v822
      %v1055 = vpop.f32.mrb[0].mxu0
      %v1056 = vadd.f32 0.0, %v1055
      %v1057 = vpop.f32.mrb[0].mxu0
      %v1058 = vadd.f32 0.0, %v1057
      %1059 = vmatprep.mubr.f32.mxu0 0.0
      %1060 = vmatmul.mubr.f32.gmra.mrb[0].mxu0 %v825
      %v1061 = vpop.f32.mrb[0].mxu0
      %v1062 = vadd.f32 0.0, %v1061
      %v1063 = vpop.f32.mrb[0].mxu0
      %v1064 = vadd.f32 0.0, %v1063
      %1065 = vmatprep.mubr.f32.mxu0 0.0
      %1066 = vmatmul.mubr.f32.gmra.mrb[0].mxu0 %v828
      %v1067 = vpop.f32.mrb[0].mxu0
      %v1068 = vadd.f32 0.0, %v1067
      %v1069 = vpop.f32.mrb[0].mxu0
      %v1070 = vadd.f32 0.0, %v1069
      %1071 = vmatprep.mubr.f32.mxu0 0.0
      %1072 = vmatmul.mubr.f32.gmra.mrb[0].mxu0 %v831
      %v1073 = vpop.f32.mrb[0].mxu0
      %v1074 = vadd.f32 0.0, %v1073
      %v1075 = vpop.f32.mrb[0].mxu0
      %v1076 = vadd.f32 0.0, %v1075
      %1077 = vmatprep.mubr.f32.mxu0 0.0
      %1078 = vmatmul.mubr.f32.gmra.mrb[0].mxu0 %v834
      %v1079 = vpop.f32.mrb[0].mxu0
      %v1080 = vadd.f32 0.0, %v1079
      %v1081 = vpop.f32.mrb[0].mxu0
      %v1082 = vadd.f32 0.0, %v1081
      %1083 = vmatprep.mubr.f32.mxu0 0.0
      %1084 = vmatmul.mubr.f32.gmra.mrb[0].mxu0 %v837
      %v1085 = vpop.f32.mrb[0].mxu0
      %v1086 = vadd.f32 0.0, %v1085
      %v1087 = vpop.f32.mrb[0].mxu0
      %v1088 = vadd.f32 0.0, %v1087
      %1089 = vmatprep.mubr.f32.mxu0 0.0
      %1090 = vmatmul.mubr.f32.gmra.mrb[0].mxu0 %v840
      %v1091 = vpop.f32.mrb[0].mxu0
      %v1092 = vadd.f32 0.0, %v1091
      %v1093 = vpop.f32.mrb[0].mxu0
      %v1094 = vadd.f32 0.0, %v1093
      %1095 = vmatprep.mubr.f32.mxu0 0.0
      %1096 = vmatmul.mubr.f32.gmra.mrb[0].mxu0 %v843
      %v1097 = vpop.f32.mrb[0].mxu0
      %v1098 = vadd.f32 0.0, %v1097
      %v1099 = vpop.f32.mrb[0].mxu0
      %v1100 = vadd.f32 0.0, %v1099
      %1101 = vdwg.mxu0
      %v1102 = vld [vmem:[%s3] sm:$0x7]
      %vm1135 = vcmask 1046528
      %v1136 = vrot.slane %v912, 1
      %v1137 = vrot.slane %v918, 1
      %v1138 = vsel %vm1135, %v1136, %v1137
      %v1139 = vrot.slane %v924, 1
      %v1140 = vrot.slane %v930, 1
      %v1141 = vsel %vm1135, %v1139, %v1140
      %v1142 = vrot.slane %v936, 1
      %v1143 = vrot.slane %v942, 1
      %v1144 = vsel %vm1135, %v1142, %v1143
      %v1145 = vrot.slane %v948, 1
      %v1146 = vrot.slane %v954, 1
      %v1147 = vsel %vm1135, %v1145, %v1146
      %v1148 = vrot.slane %v960, 1
      %v1149 = vrot.slane %v966, 1
      %v1150 = vsel %vm1135, %v1148, %v1149
      %v1151 = vrot.slane %v972, 1
      %v1152 = vrot.slane %v978, 1
      %v1153 = vsel %vm1135, %v1151, %v1152
      %v1154 = vrot.slane %v984, 1
      %v1155 = vrot.slane %v990, 1
      %v1156 = vsel %vm1135, %v1154, %v1155
      %v1157 = vrot.slane %v996, 1
      %v1158 = vrot.slane %v1002, 1
      %v1159 = vsel %vm1135, %v1157, %v1158
      %v1160 = vrot.slane %v1008, 1
      %v1161 = vrot.slane %v1014, 1
      %v1162 = vsel %vm1135, %v1160, %v1161
      %v1163 = vrot.slane %v1020, 1
      %v1164 = vrot.slane %v1026, 1
      %v1165 = vsel %vm1135, %v1163, %v1164
      %v1166 = vrot.slane %v1032, 1
      %v1167 = vrot.slane %v1038, 1
      %v1168 = vsel %vm1135, %v1166, %v1167
      %v1169 = vrot.slane %v1044, 1
      %v1170 = vrot.slane %v1050, 1
      %v1171 = vsel %vm1135, %v1169, %v1170
      %v1172 = vrot.slane %v1056, 1
      %v1173 = vrot.slane %v1062, 1
      %v1174 = vsel %vm1135, %v1172, %v1173
      %v1175 = vrot.slane %v1068, 1
      %v1176 = vrot.slane %v1074, 1
      %v1177 = vsel %vm1135, %v1175, %v1176
      %v1178 = vrot.slane %v1080, 1
      %v1179 = vrot.slane %v1086, 1
      %v1180 = vsel %vm1135, %v1178, %v1179
      %v1181 = vrot.slane %v1092, 1
      %v1182 = vrot.slane %v1098, 1
      %v1183 = vsel %vm1135, %v1181, %v1182
      %1184 = vrot.lane.b32.xlu0 %v1138, 112
      %v1185 = vpop.permute.xlu0 %1184
      %1186 = vrot.lane.b32.xlu0 %v1137, 112
      %v1187 = vpop.permute.xlu0 %1186
      %1188 = vrot.lane.b32.xlu0 %v1141, 112
      %v1189 = vpop.permute.xlu0 %1188
      %1190 = vrot.lane.b32.xlu0 %v1140, 112
      %v1191 = vpop.permute.xlu0 %1190
      %1192 = vrot.lane.b32.xlu0 %v1144, 112
      %v1193 = vpop.permute.xlu0 %1192
      %1194 = vrot.lane.b32.xlu0 %v1143, 112
      %v1195 = vpop.permute.xlu0 %1194
      %1196 = vrot.lane.b32.xlu0 %v1147, 112
      %v1197 = vpop.permute.xlu0 %1196
      %1198 = vrot.lane.b32.xlu0 %v1146, 112
      %v1199 = vpop.permute.xlu0 %1198
      %1200 = vrot.lane.b32.xlu0 %v1150, 112
      %v1201 = vpop.permute.xlu0 %1200
      %1202 = vrot.lane.b32.xlu0 %v1149, 112
      %v1203 = vpop.permute.xlu0 %1202
      %1204 = vrot.lane.b32.xlu0 %v1153, 112
      %v1205 = vpop.permute.xlu0 %1204
      %1206 = vrot.lane.b32.xlu0 %v1152, 112
      %v1207 = vpop.permute.xlu0 %1206
      %1208 = vrot.lane.b32.xlu0 %v1156, 112
      %v1209 = vpop.permute.xlu0 %1208
      %1210 = vrot.lane.b32.xlu0 %v1155, 112
      %v1211 = vpop.permute.xlu0 %1210
      %1212 = vrot.lane.b32.xlu0 %v1159, 112
      %v1213 = vpop.permute.xlu0 %1212
      %1214 = vrot.lane.b32.xlu0 %v1158, 112
      %v1215 = vpop.permute.xlu0 %1214
      %1216 = vrot.lane.b32.xlu0 %v1162, 112
      %v1217 = vpop.permute.xlu0 %1216
      %1218 = vrot.lane.b32.xlu0 %v1161, 112
      %v1219 = vpop.permute.xlu0 %1218
      %1220 = vrot.lane.b32.xlu0 %v1165, 112
      %v1221 = vpop.permute.xlu0 %1220
      %1222 = vrot.lane.b32.xlu0 %v1164, 112
      %v1223 = vpop.permute.xlu0 %1222
      %1224 = vrot.lane.b32.xlu0 %v1168, 112
      %v1225 = vpop.permute.xlu0 %1224
      %1226 = vrot.lane.b32.xlu0 %v1167, 112
      %v1227 = vpop.permute.xlu0 %1226
      %1228 = vrot.lane.b32.xlu0 %v1171, 112
      %v1229 = vpop.permute.xlu0 %1228
      %1230 = vrot.lane.b32.xlu0 %v1170, 112
      %v1231 = vpop.permute.xlu0 %1230
      %1232 = vrot.lane.b32.xlu0 %v1174, 112
      %v1233 = vpop.permute.xlu0 %1232
      %1234 = vrot.lane.b32.xlu0 %v1173, 112
      %v1235 = vpop.permute.xlu0 %1234
      %1236 = vrot.lane.b32.xlu0 %v1177, 112
      %v1237 = vpop.permute.xlu0 %1236
      %1238 = vrot.lane.b32.xlu0 %v1176, 112
      %v1239 = vpop.permute.xlu0 %1238
      %1240 = vrot.lane.b32.xlu0 %v1180, 112
      %v1241 = vpop.permute.xlu0 %1240
      %1242 = vrot.lane.b32.xlu0 %v1179, 112
      %v1243 = vpop.permute.xlu0 %1242
      %1244 = vrot.lane.b32.xlu0 %v1183, 112
      %v1245 = vpop.permute.xlu0 %1244
      %1246 = vrot.lane.b32.xlu0 %v1182, 112
      %v1247 = vpop.permute.xlu0 %1246
      %v1280 = vadd.f32 %v912, %v1185
      %v1281 = vadd.f32 %v918, %v1187
      %v1282 = vadd.f32 %v924, %v1189
      %v1283 = vadd.f32 %v930, %v1191
      %v1284 = vadd.f32 %v936, %v1193
      %v1285 = vadd.f32 %v942, %v1195
      %v1286 = vadd.f32 %v948, %v1197
      %v1287 = vadd.f32 %v954, %v1199
      %v1288 = vadd.f32 %v960, %v1201
      %v1289 = vadd.f32 %v966, %v1203
      %v1290 = vadd.f32 %v972, %v1205
      %v1291 = vadd.f32 %v978, %v1207
      %v1292 = vadd.f32 %v984, %v1209
      %v1293 = vadd.f32 %v990, %v1211
      %v1294 = vadd.f32 %v996, %v1213
      %v1295 = vadd.f32 %v1002, %v1215
      %v1296 = vadd.f32 %v1008, %v1217
      %v1297 = vadd.f32 %v1014, %v1219
      %v1298 = vadd.f32 %v1020, %v1221
      %v1299 = vadd.f32 %v1026, %v1223
      %v1300 = vadd.f32 %v1032, %v1225
      %v1301 = vadd.f32 %v1038, %v1227
      %v1302 = vadd.f32 %v1044, %v1229
      %v1303 = vadd.f32 %v1050, %v1231
      %v1304 = vadd.f32 %v1056, %v1233
      %v1305 = vadd.f32 %v1062, %v1235
      %v1306 = vadd.f32 %v1068, %v1237
      %v1307 = vadd.f32 %v1074, %v1239
      %v1308 = vadd.f32 %v1080, %v1241
      %v1309 = vadd.f32 %v1086, %v1243
      %v1310 = vadd.f32 %v1092, %v1245
      %v1311 = vadd.f32 %v1098, %v1247
      %vm1312 = vcmask 1045504
      %v1313 = vrot.slane %v912, 2
      %v1314 = vrot.slane %v918, 2
      %v1315 = vsel %vm1312, %v1313, %v1314
      %v1316 = vrot.slane %v924, 2
      %v1317 = vrot.slane %v930, 2
      %v1318 = vsel %vm1312, %v1316, %v1317
      %v1319 = vrot.slane %v936, 2
      %v1320 = vrot.slane %v942, 2
      %v1321 = vsel %vm1312, %v1319, %v1320
      %v1322 = vrot.slane %v948, 2
      %v1323 = vrot.slane %v954, 2
      %v1324 = vsel %vm1312, %v1322, %v1323
      %v1325 = vrot.slane %v960, 2
      %v1326 = vrot.slane %v966, 2
      %v1327 = vsel %vm1312, %v1325, %v1326
      %v1328 = vrot.slane %v972, 2
      %v1329 = vrot.slane %v978, 2
      %v1330 = vsel %vm1312, %v1328, %v1329
      %v1331 = vrot.slane %v984, 2
      %v1332 = vrot.slane %v990, 2
      %v1333 = vsel %vm1312, %v1331, %v1332
      %v1334 = vrot.slane %v996, 2
      %v1335 = vrot.slane %v1002, 2
      %v1336 = vsel %vm1312, %v1334, %v1335
      %v1337 = vrot.slane %v1008, 2
      %v1338 = vrot.slane %v1014, 2
      %v1339 = vsel %vm1312, %v1337, %v1338
      %v1340 = vrot.slane %v1020, 2
      %v1341 = vrot.slane %v1026, 2
      %v1342 = vsel %vm1312, %v1340, %v1341
      %v1343 = vrot.slane %v1032, 2
      %v1344 = vrot.slane %v1038, 2
      %v1345 = vsel %vm1312, %v1343, %v1344
      %v1346 = vrot.slane %v1044, 2
      %v1347 = vrot.slane %v1050, 2
      %v1348 = vsel %vm1312, %v1346, %v1347
      %v1349 = vrot.slane %v1056, 2
      %v1350 = vrot.slane %v1062, 2
      %v1351 = vsel %vm1312, %v1349, %v1350
      %v1352 = vrot.slane %v1068, 2
      %v1353 = vrot.slane %v1074, 2
      %v1354 = vsel %vm1312, %v1352, %v1353
      %v1355 = vrot.slane %v1080, 2
      %v1356 = vrot.slane %v1086, 2
      %v1357 = vsel %vm1312, %v1355, %v1356
      %v1358 = vrot.slane %v1092, 2
      %v1359 = vrot.slane %v1098, 2
      %v1360 = vsel %vm1312, %v1358, %v1359
      %1361 = vrot.lane.b32.xlu0 %v1315, 96
      %v1362 = vpop.permute.xlu0 %1361
      %1363 = vrot.lane.b32.xlu0 %v1314, 96
      %v1364 = vpop.permute.xlu0 %1363
      %1365 = vrot.lane.b32.xlu0 %v1318, 96
      %v1366 = vpop.permute.xlu0 %1365
      %1367 = vrot.lane.b32.xlu0 %v1317, 96
      %v1368 = vpop.permute.xlu0 %1367
      %1369 = vrot.lane.b32.xlu0 %v1321, 96
      %v1370 = vpop.permute.xlu0 %1369
      %1371 = vrot.lane.b32.xlu0 %v1320, 96
      %v1372 = vpop.permute.xlu0 %1371
      %1373 = vrot.lane.b32.xlu0 %v1324, 96
      %v1374 = vpop.permute.xlu0 %1373
      %1375 = vrot.lane.b32.xlu0 %v1323, 96
      %v1376 = vpop.permute.xlu0 %1375
      %1377 = vrot.lane.b32.xlu0 %v1327, 96
      %v1378 = vpop.permute.xlu0 %1377
      %1379 = vrot.lane.b32.xlu0 %v1326, 96
      %v1380 = vpop.permute.xlu0 %1379
      %1381 = vrot.lane.b32.xlu0 %v1330, 96
      %v1382 = vpop.permute.xlu0 %1381
      %1383 = vrot.lane.b32.xlu0 %v1329, 96
      %v1384 = vpop.permute.xlu0 %1383
      %1385 = vrot.lane.b32.xlu0 %v1333, 96
      %v1386 = vpop.permute.xlu0 %1385
      %1387 = vrot.lane.b32.xlu0 %v1332, 96
      %v1388 = vpop.permute.xlu0 %1387
      %1389 = vrot.lane.b32.xlu0 %v1336, 96
      %v1390 = vpop.permute.xlu0 %1389
      %1391 = vrot.lane.b32.xlu0 %v1335, 96
      %v1392 = vpop.permute.xlu0 %1391
      %1393 = vrot.lane.b32.xlu0 %v1339, 96
      %v1394 = vpop.permute.xlu0 %1393
      %1395 = vrot.lane.b32.xlu0 %v1338, 96
      %v1396 = vpop.permute.xlu0 %1395
      %1397 = vrot.lane.b32.xlu0 %v1342, 96
      %v1398 = vpop.permute.xlu0 %1397
      %1399 = vrot.lane.b32.xlu0 %v1341, 96
      %v1400 = vpop.permute.xlu0 %1399
      %1401 = vrot.lane.b32.xlu0 %v1345, 96
      %v1402 = vpop.permute.xlu0 %1401
      %1403 = vrot.lane.b32.xlu0 %v1344, 96
      %v1404 = vpop.permute.xlu0 %1403
      %1405 = vrot.lane.b32.xlu0 %v1348, 96
      %v1406 = vpop.permute.xlu0 %1405
      %1407 = vrot.lane.b32.xlu0 %v1347, 96
      %v1408 = vpop.permute.xlu0 %1407
      %1409 = vrot.lane.b32.xlu0 %v1351, 96
      %v1410 = vpop.permute.xlu0 %1409
      %1411 = vrot.lane.b32.xlu0 %v1350, 96
      %v1412 = vpop.permute.xlu0 %1411
      %1413 = vrot.lane.b32.xlu0 %v1354, 96
      %v1414 = vpop.permute.xlu0 %1413
      %1415 = vrot.lane.b32.xlu0 %v1353, 96
      %v1416 = vpop.permute.xlu0 %1415
      %1417 = vrot.lane.b32.xlu0 %v1357, 96
      %v1418 = vpop.permute.xlu0 %1417
      %1419 = vrot.lane.b32.xlu0 %v1356, 96
      %v1420 = vpop.permute.xlu0 %1419
      %1421 = vrot.lane.b32.xlu0 %v1360, 96
      %v1422 = vpop.permute.xlu0 %1421
      %1423 = vrot.lane.b32.xlu0 %v1359, 96
      %v1424 = vpop.permute.xlu0 %1423
      %v1457 = vadd.f32 %v1280, %v1362
      %v1458 = vadd.f32 %v1281, %v1364
      %v1459 = vadd.f32 %v1282, %v1366
      %v1460 = vadd.f32 %v1283, %v1368
      %v1461 = vadd.f32 %v1284, %v1370
      %v1462 = vadd.f32 %v1285, %v1372
      %v1463 = vadd.f32 %v1286, %v1374
      %v1464 = vadd.f32 %v1287, %v1376
      %v1465 = vadd.f32 %v1288, %v1378
      %v1466 = vadd.f32 %v1289, %v1380
      %v1467 = vadd.f32 %v1290, %v1382
      %v1468 = vadd.f32 %v1291, %v1384
      %v1469 = vadd.f32 %v1292, %v1386
      %v1470 = vadd.f32 %v1293, %v1388
      %v1471 = vadd.f32 %v1294, %v1390
      %v1472 = vadd.f32 %v1295, %v1392
      %v1473 = vadd.f32 %v1296, %v1394
      %v1474 = vadd.f32 %v1297, %v1396
      %v1475 = vadd.f32 %v1298, %v1398
      %v1476 = vadd.f32 %v1299, %v1400
      %v1477 = vadd.f32 %v1300, %v1402
      %v1478 = vadd.f32 %v1301, %v1404
      %v1479 = vadd.f32 %v1302, %v1406
      %v1480 = vadd.f32 %v1303, %v1408
      %v1481 = vadd.f32 %v1304, %v1410
      %v1482 = vadd.f32 %v1305, %v1412
      %v1483 = vadd.f32 %v1306, %v1414
      %v1484 = vadd.f32 %v1307, %v1416
      %v1485 = vadd.f32 %v1308, %v1418
      %v1486 = vadd.f32 %v1309, %v1420
      %v1487 = vadd.f32 %v1310, %v1422
      %v1488 = vadd.f32 %v1311, %v1424
      %v1489 = vlaneseq
      %v1490 = vshrl.u32 %v1489, 7
      %v1491 = vsub.s32 0, %v1490
      %v1492 = vrot.slane %v1102, %v1491
      %v1493 = vadd.f32 %v1457, %v1492
      %v1494 = vadd.f32 %v1458, %v1492
      %v1495 = vadd.f32 %v1459, %v1492
      %v1496 = vadd.f32 %v1460, %v1492
      %v1497 = vadd.f32 %v1461, %v1492
      %v1498 = vadd.f32 %v1462, %v1492
      %v1499 = vadd.f32 %v1463, %v1492
      %v1500 = vadd.f32 %v1464, %v1492
      %v1501 = vadd.f32 %v1465, %v1492
      %v1502 = vadd.f32 %v1466, %v1492
      %v1503 = vadd.f32 %v1467, %v1492
      %v1504 = vadd.f32 %v1468, %v1492
      %v1505 = vadd.f32 %v1469, %v1492
      %v1506 = vadd.f32 %v1470, %v1492
      %v1507 = vadd.f32 %v1471, %v1492
      %v1508 = vadd.f32 %v1472, %v1492
      %v1509 = vadd.f32 %v1473, %v1492
      %v1510 = vadd.f32 %v1474, %v1492
      %v1511 = vadd.f32 %v1475, %v1492
      %v1512 = vadd.f32 %v1476, %v1492
      %v1513 = vadd.f32 %v1477, %v1492
      %v1514 = vadd.f32 %v1478, %v1492
      %v1515 = vadd.f32 %v1479, %v1492
      %v1516 = vadd.f32 %v1480, %v1492
      %v1517 = vadd.f32 %v1481, %v1492
      %v1518 = vadd.f32 %v1482, %v1492
      %v1519 = vadd.f32 %v1483, %v1492
      %v1520 = vadd.f32 %v1484, %v1492
      %v1521 = vadd.f32 %v1485, %v1492
      %v1522 = vadd.f32 %v1486, %v1492
      %v1523 = vadd.f32 %v1487, %v1492
      %v1524 = vadd.f32 %v1488, %v1492
      %v1525 = vmax.f32 %v1493, 0.0
      %v1526 = vmax.f32 %v1494, 0.0
      %v1527 = vmax.f32 %v1495, 0.0
      %v1528 = vmax.f32 %v1496, 0.0
      %v1529 = vmax.f32 %v1497, 0.0
      %v1530 = vmax.f32 %v1498, 0.0
      %v1531 = vmax.f32 %v1499, 0.0
      %v1532 = vmax.f32 %v1500, 0.0
      %v1533 = vmax.f32 %v1501, 0.0
      %v1534 = vmax.f32 %v1502, 0.0
      %v1535 = vmax.f32 %v1503, 0.0
      %v1536 = vmax.f32 %v1504, 0.0
      %v1537 = vmax.f32 %v1505, 0.0
      %v1538 = vmax.f32 %v1506, 0.0
      %v1539 = vmax.f32 %v1507, 0.0
      %v1540 = vmax.f32 %v1508, 0.0
      %v1541 = vmax.f32 %v1509, 0.0
      %v1542 = vmax.f32 %v1510, 0.0
      %v1543 = vmax.f32 %v1511, 0.0
      %v1544 = vmax.f32 %v1512, 0.0
      %v1545 = vmax.f32 %v1513, 0.0
      %v1546 = vmax.f32 %v1514, 0.0
      %v1547 = vmax.f32 %v1515, 0.0
      %v1548 = vmax.f32 %v1516, 0.0
      %v1549 = vmax.f32 %v1517, 0.0
      %v1550 = vmax.f32 %v1518, 0.0
      %v1551 = vmax.f32 %v1519, 0.0
      %v1552 = vmax.f32 %v1520, 0.0
      %v1553 = vmax.f32 %v1521, 0.0
      %v1554 = vmax.f32 %v1522, 0.0
      %v1555 = vmax.f32 %v1523, 0.0
      %v1556 = vmax.f32 %v1524, 0.0
      %vm1557 = vcmask 130048
      %v1558 = vsel %vm1557, %v1525, -inf
      %vm1559 = vcmask 128000
      %v1560 = vsel %vm1559, %v1526, -inf
      %v1561 = vmax.f32 %v1558, %v1560
      %v1562 = vrot.slane %v1561, 4
      %v1563 = vmax.f32 %v1561, %v1562
      %v1564 = vrot.slane %v1563, 2
      %v1565 = vmax.f32 %v1563, %v1564
      %v1566 = vrot.slane %v1565, 1
      %v1567 = vmax.f32 %v1565, %v1566
      %v1568 = vsel %vm1557, %v1527, -inf
      %v1569 = vsel %vm1559, %v1528, -inf
      %v1570 = vmax.f32 %v1568, %v1569
      %v1571 = vrot.slane %v1570, 4
      %v1572 = vmax.f32 %v1570, %v1571
      %v1573 = vrot.slane %v1572, 2
      %v1574 = vmax.f32 %v1572, %v1573
      %v1575 = vrot.slane %v1574, 1
      %v1576 = vmax.f32 %v1574, %v1575
      %v1577 = vsel %vm1557, %v1529, -inf
      %v1578 = vsel %vm1559, %v1530, -inf
      %v1579 = vmax.f32 %v1577, %v1578
      %v1580 = vrot.slane %v1579, 4
      %v1581 = vmax.f32 %v1579, %v1580
      %v1582 = vrot.slane %v1581, 2
      %v1583 = vmax.f32 %v1581, %v1582
      %v1584 = vrot.slane %v1583, 1
      %v1585 = vmax.f32 %v1583, %v1584
      %v1586 = vsel %vm1557, %v1531, -inf
      %v1587 = vsel %vm1559, %v1532, -inf
      %v1588 = vmax.f32 %v1586, %v1587
      %v1589 = vrot.slane %v1588, 4
      %v1590 = vmax.f32 %v1588, %v1589
      %v1591 = vrot.slane %v1590, 2
      %v1592 = vmax.f32 %v1590, %v1591
      %v1593 = vrot.slane %v1592, 1
      %v1594 = vmax.f32 %v1592, %v1593
      %v1595 = vsel %vm1557, %v1533, -inf
      %v1596 = vsel %vm1559, %v1534, -inf
      %v1597 = vmax.f32 %v1595, %v1596
      %v1598 = vrot.slane %v1597, 4
      %v1599 = vmax.f32 %v1597, %v1598
      %v1600 = vrot.slane %v1599, 2
      %v1601 = vmax.f32 %v1599, %v1600
      %v1602 = vrot.slane %v1601, 1
      %v1603 = vmax.f32 %v1601, %v1602
      %v1604 = vsel %vm1557, %v1535, -inf
      %v1605 = vsel %vm1559, %v1536, -inf
      %v1606 = vmax.f32 %v1604, %v1605
      %v1607 = vrot.slane %v1606, 4
      %v1608 = vmax.f32 %v1606, %v1607
      %v1609 = vrot.slane %v1608, 2
      %v1610 = vmax.f32 %v1608, %v1609
      %v1611 = vrot.slane %v1610, 1
      %v1612 = vmax.f32 %v1610, %v1611
      %v1613 = vsel %vm1557, %v1537, -inf
      %v1614 = vsel %vm1559, %v1538, -inf
      %v1615 = vmax.f32 %v1613, %v1614
      %v1616 = vrot.slane %v1615, 4
      %v1617 = vmax.f32 %v1615, %v1616
      %v1618 = vrot.slane %v1617, 2
      %v1619 = vmax.f32 %v1617, %v1618
      %v1620 = vrot.slane %v1619, 1
      %v1621 = vmax.f32 %v1619, %v1620
      %v1622 = vsel %vm1557, %v1539, -inf
      %v1623 = vsel %vm1559, %v1540, -inf
      %v1624 = vmax.f32 %v1622, %v1623
      %v1625 = vrot.slane %v1624, 4
      %v1626 = vmax.f32 %v1624, %v1625
      %v1627 = vrot.slane %v1626, 2
      %v1628 = vmax.f32 %v1626, %v1627
      %v1629 = vrot.slane %v1628, 1
      %v1630 = vmax.f32 %v1628, %v1629
      %v1631 = vsel %vm1557, %v1541, -inf
      %v1632 = vsel %vm1559, %v1542, -inf
      %v1633 = vmax.f32 %v1631, %v1632
      %v1634 = vrot.slane %v1633, 4
      %v1635 = vmax.f32 %v1633, %v1634
      %v1636 = vrot.slane %v1635, 2
      %v1637 = vmax.f32 %v1635, %v1636
      %v1638 = vrot.slane %v1637, 1
      %v1639 = vmax.f32 %v1637, %v1638
      %v1640 = vsel %vm1557, %v1543, -inf
      %v1641 = vsel %vm1559, %v1544, -inf
      %v1642 = vmax.f32 %v1640, %v1641
      %v1643 = vrot.slane %v1642, 4
      %v1644 = vmax.f32 %v1642, %v1643
      %v1645 = vrot.slane %v1644, 2
      %v1646 = vmax.f32 %v1644, %v1645
      %v1647 = vrot.slane %v1646, 1
      %v1648 = vmax.f32 %v1646, %v1647
      %v1649 = vsel %vm1557, %v1545, -inf
      %v1650 = vsel %vm1559, %v1546, -inf
      %v1651 = vmax.f32 %v1649, %v1650
      %v1652 = vrot.slane %v1651, 4
      %v1653 = vmax.f32 %v1651, %v1652
      %v1654 = vrot.slane %v1653, 2
      %v1655 = vmax.f32 %v1653, %v1654
      %v1656 = vrot.slane %v1655, 1
      %v1657 = vmax.f32 %v1655, %v1656
      %v1658 = vsel %vm1557, %v1547, -inf
      %v1659 = vsel %vm1559, %v1548, -inf
      %v1660 = vmax.f32 %v1658, %v1659
      %v1661 = vrot.slane %v1660, 4
      %v1662 = vmax.f32 %v1660, %v1661
      %v1663 = vrot.slane %v1662, 2
      %v1664 = vmax.f32 %v1662, %v1663
      %v1665 = vrot.slane %v1664, 1
      %v1666 = vmax.f32 %v1664, %v1665
      %v1667 = vsel %vm1557, %v1549, -inf
      %v1668 = vsel %vm1559, %v1550, -inf
      %v1669 = vmax.f32 %v1667, %v1668
      %v1670 = vrot.slane %v1669, 4
      %v1671 = vmax.f32 %v1669, %v1670
      %v1672 = vrot.slane %v1671, 2
      %v1673 = vmax.f32 %v1671, %v1672
      %v1674 = vrot.slane %v1673, 1
      %v1675 = vmax.f32 %v1673, %v1674
      %v1676 = vsel %vm1557, %v1551, -inf
      %v1677 = vsel %vm1559, %v1552, -inf
      %v1678 = vmax.f32 %v1676, %v1677
      %v1679 = vrot.slane %v1678, 4
      %v1680 = vmax.f32 %v1678, %v1679
      %v1681 = vrot.slane %v1680, 2
      %v1682 = vmax.f32 %v1680, %v1681
      %v1683 = vrot.slane %v1682, 1
      %v1684 = vmax.f32 %v1682, %v1683
      %v1685 = vsel %vm1557, %v1553, -inf
      %v1686 = vsel %vm1559, %v1554, -inf
      %v1687 = vmax.f32 %v1685, %v1686
      %v1688 = vrot.slane %v1687, 4
      %v1689 = vmax.f32 %v1687, %v1688
      %v1690 = vrot.slane %v1689, 2
      %v1691 = vmax.f32 %v1689, %v1690
      %v1692 = vrot.slane %v1691, 1
      %v1693 = vmax.f32 %v1691, %v1692
      %v1694 = vsel %vm1557, %v1555, -inf
      %v1695 = vsel %vm1559, %v1556, -inf
      %v1696 = vmax.f32 %v1694, %v1695
      %v1697 = vrot.slane %v1696, 4
      %v1698 = vmax.f32 %v1696, %v1697
      %v1699 = vrot.slane %v1698, 2
      %v1700 = vmax.f32 %v1698, %v1699
      %v1701 = vrot.slane %v1700, 1
      %v1702 = vmax.f32 %v1700, %v1701
      %vm1703 = vcmask 1044480
      %v1704 = vrot.slane %v912, 3
      %v1705 = vrot.slane %v918, 3
      %v1706 = vsel %vm1703, %v1704, %v1705
      %v1707 = vrot.slane %v924, 3
      %v1708 = vrot.slane %v930, 3
      %v1709 = vsel %vm1703, %v1707, %v1708
      %v1710 = vrot.slane %v936, 3
      %v1711 = vrot.slane %v942, 3
      %v1712 = vsel %vm1703, %v1710, %v1711
      %v1713 = vrot.slane %v948, 3
      %v1714 = vrot.slane %v954, 3
      %v1715 = vsel %vm1703, %v1713, %v1714
      %v1716 = vrot.slane %v960, 3
      %v1717 = vrot.slane %v966, 3
      %v1718 = vsel %vm1703, %v1716, %v1717
      %v1719 = vrot.slane %v972, 3
      %v1720 = vrot.slane %v978, 3
      %v1721 = vsel %vm1703, %v1719, %v1720
      %v1722 = vrot.slane %v984, 3
      %v1723 = vrot.slane %v990, 3
      %v1724 = vsel %vm1703, %v1722, %v1723
      %v1725 = vrot.slane %v996, 3
      %v1726 = vrot.slane %v1002, 3
      %v1727 = vsel %vm1703, %v1725, %v1726
      %v1728 = vrot.slane %v1008, 3
      %v1729 = vrot.slane %v1014, 3
      %v1730 = vsel %vm1703, %v1728, %v1729
      %v1731 = vrot.slane %v1020, 3
      %v1732 = vrot.slane %v1026, 3
      %v1733 = vsel %vm1703, %v1731, %v1732
      %v1734 = vrot.slane %v1032, 3
      %v1735 = vrot.slane %v1038, 3
      %v1736 = vsel %vm1703, %v1734, %v1735
      %v1737 = vrot.slane %v1044, 3
      %v1738 = vrot.slane %v1050, 3
      %v1739 = vsel %vm1703, %v1737, %v1738
      %v1740 = vrot.slane %v1056, 3
      %v1741 = vrot.slane %v1062, 3
      %v1742 = vsel %vm1703, %v1740, %v1741
      %v1743 = vrot.slane %v1068, 3
      %v1744 = vrot.slane %v1074, 3
      %v1745 = vsel %vm1703, %v1743, %v1744
      %v1746 = vrot.slane %v1080, 3
      %v1747 = vrot.slane %v1086, 3
      %v1748 = vsel %vm1703, %v1746, %v1747
      %v1749 = vrot.slane %v1092, 3
      %v1750 = vrot.slane %v1098, 3
      %v1751 = vsel %vm1703, %v1749, %v1750
      %1752 = vrot.lane.b32.xlu0 %v1706, 80
      %v1753 = vpop.permute.xlu0 %1752
      %1754 = vrot.lane.b32.xlu0 %v1705, 80
      %v1755 = vpop.permute.xlu0 %1754
      %1756 = vrot.lane.b32.xlu0 %v1709, 80
      %v1757 = vpop.permute.xlu0 %1756
      %1758 = vrot.lane.b32.xlu0 %v1708, 80
      %v1759 = vpop.permute.xlu0 %1758
      %1760 = vrot.lane.b32.xlu0 %v1712, 80
      %v1761 = vpop.permute.xlu0 %1760
      %1762 = vrot.lane.b32.xlu0 %v1711, 80
      %v1763 = vpop.permute.xlu0 %1762
      %1764 = vrot.lane.b32.xlu0 %v1715, 80
      %v1765 = vpop.permute.xlu0 %1764
      %1766 = vrot.lane.b32.xlu0 %v1714, 80
      %v1767 = vpop.permute.xlu0 %1766
      %1768 = vrot.lane.b32.xlu0 %v1718, 80
      %v1769 = vpop.permute.xlu0 %1768
      %1770 = vrot.lane.b32.xlu0 %v1717, 80
      %v1771 = vpop.permute.xlu0 %1770
      %1772 = vrot.lane.b32.xlu0 %v1721, 80
      %v1773 = vpop.permute.xlu0 %1772
      %1774 = vrot.lane.b32.xlu0 %v1720, 80
      %v1775 = vpop.permute.xlu0 %1774
      %1776 = vrot.lane.b32.xlu0 %v1724, 80
      %v1777 = vpop.permute.xlu0 %1776
      %1778 = vrot.lane.b32.xlu0 %v1723, 80
      %v1779 = vpop.permute.xlu0 %1778
      %1780 = vrot.lane.b32.xlu0 %v1727, 80
      %v1781 = vpop.permute.xlu0 %1780
      %1782 = vrot.lane.b32.xlu0 %v1726, 80
      %v1783 = vpop.permute.xlu0 %1782
      %1784 = vrot.lane.b32.xlu0 %v1730, 80
      %v1785 = vpop.permute.xlu0 %1784
      %1786 = vrot.lane.b32.xlu0 %v1729, 80
      %v1787 = vpop.permute.xlu0 %1786
      %1788 = vrot.lane.b32.xlu0 %v1733, 80
      %v1789 = vpop.permute.xlu0 %1788
      %1790 = vrot.lane.b32.xlu0 %v1732, 80
      %v1791 = vpop.permute.xlu0 %1790
      %1792 = vrot.lane.b32.xlu0 %v1736, 80
      %v1793 = vpop.permute.xlu0 %1792
      %1794 = vrot.lane.b32.xlu0 %v1735, 80
      %v1795 = vpop.permute.xlu0 %1794
      %1796 = vrot.lane.b32.xlu0 %v1739, 80
      %v1797 = vpop.permute.xlu0 %1796
      %1798 = vrot.lane.b32.xlu0 %v1738, 80
      %v1799 = vpop.permute.xlu0 %1798
      %1800 = vrot.lane.b32.xlu0 %v1742, 80
      %v1801 = vpop.permute.xlu0 %1800
      %1802 = vrot.lane.b32.xlu0 %v1741, 80
      %v1803 = vpop.permute.xlu0 %1802
      %1804 = vrot.lane.b32.xlu0 %v1745, 80
      %v1805 = vpop.permute.xlu0 %1804
      %1806 = vrot.lane.b32.xlu0 %v1744, 80
      %v1807 = vpop.permute.xlu0 %1806
      %1808 = vrot.lane.b32.xlu0 %v1748, 80
      %v1809 = vpop.permute.xlu0 %1808
      %1810 = vrot.lane.b32.xlu0 %v1747, 80
      %v1811 = vpop.permute.xlu0 %1810
      %1812 = vrot.lane.b32.xlu0 %v1751, 80
      %v1813 = vpop.permute.xlu0 %1812
      %1814 = vrot.lane.b32.xlu0 %v1750, 80
      %v1815 = vpop.permute.xlu0 %1814
      %v1848 = vadd.f32 %v1457, %v1753
      %v1849 = vadd.f32 %v1458, %v1755
      %v1850 = vadd.f32 %v1459, %v1757
      %v1851 = vadd.f32 %v1460, %v1759
      %v1852 = vadd.f32 %v1461, %v1761
      %v1853 = vadd.f32 %v1462, %v1763
      %v1854 = vadd.f32 %v1463, %v1765
      %v1855 = vadd.f32 %v1464, %v1767
      %v1856 = vadd.f32 %v1465, %v1769
      %v1857 = vadd.f32 %v1466, %v1771
      %v1858 = vadd.f32 %v1467, %v1773
      %v1859 = vadd.f32 %v1468, %v1775
      %v1860 = vadd.f32 %v1469, %v1777
      %v1861 = vadd.f32 %v1470, %v1779
      %v1862 = vadd.f32 %v1471, %v1781
      %v1863 = vadd.f32 %v1472, %v1783
      %v1864 = vadd.f32 %v1473, %v1785
      %v1865 = vadd.f32 %v1474, %v1787
      %v1866 = vadd.f32 %v1475, %v1789
      %v1867 = vadd.f32 %v1476, %v1791
      %v1868 = vadd.f32 %v1477, %v1793
      %v1869 = vadd.f32 %v1478, %v1795
      %v1870 = vadd.f32 %v1479, %v1797
      %v1871 = vadd.f32 %v1480, %v1799
      %v1872 = vadd.f32 %v1481, %v1801
      %v1873 = vadd.f32 %v1482, %v1803
      %v1874 = vadd.f32 %v1483, %v1805
      %v1875 = vadd.f32 %v1484, %v1807
      %v1876 = vadd.f32 %v1485, %v1809
      %v1877 = vadd.f32 %v1486, %v1811
      %v1878 = vadd.f32 %v1487, %v1813
      %v1879 = vadd.f32 %v1488, %v1815
      %v1880 = vlaneseq
      %v1881 = vshrl.u32 %v1880, 7
      %v1882 = vsub.s32 1, %v1881
      %v1883 = vrot.slane %v1102, %v1882
      %1885 = vrot.lane.b32.xlu0 %v1883, 48
      %v1886 = vpop.permute.xlu0 %1885
      %v1888 = vadd.f32 %v1848, %v1886
      %v1889 = vadd.f32 %v1849, %v1886
      %v1890 = vadd.f32 %v1850, %v1886
      %v1891 = vadd.f32 %v1851, %v1886
      %v1892 = vadd.f32 %v1852, %v1886
      %v1893 = vadd.f32 %v1853, %v1886
      %v1894 = vadd.f32 %v1854, %v1886
      %v1895 = vadd.f32 %v1855, %v1886
      %v1896 = vadd.f32 %v1856, %v1886
      %v1897 = vadd.f32 %v1857, %v1886
      %v1898 = vadd.f32 %v1858, %v1886
      %v1899 = vadd.f32 %v1859, %v1886
      %v1900 = vadd.f32 %v1860, %v1886
      %v1901 = vadd.f32 %v1861, %v1886
      %v1902 = vadd.f32 %v1862, %v1886
      %v1903 = vadd.f32 %v1863, %v1886
      %v1904 = vadd.f32 %v1864, %v1886
      %v1905 = vadd.f32 %v1865, %v1886
      %v1906 = vadd.f32 %v1866, %v1886
      %v1907 = vadd.f32 %v1867, %v1886
      %v1908 = vadd.f32 %v1868, %v1886
      %v1909 = vadd.f32 %v1869, %v1886
      %v1910 = vadd.f32 %v1870, %v1886
      %v1911 = vadd.f32 %v1871, %v1886
      %v1912 = vadd.f32 %v1872, %v1886
      %v1913 = vadd.f32 %v1873, %v1886
      %v1914 = vadd.f32 %v1874, %v1886
      %v1915 = vadd.f32 %v1875, %v1886
      %v1916 = vadd.f32 %v1876, %v1886
      %v1917 = vadd.f32 %v1877, %v1886
      %v1918 = vadd.f32 %v1878, %v1886
      %v1919 = vadd.f32 %v1879, %v1886
      %v1920 = vmax.f32 %v1888, 0.0
      %v1921 = vmax.f32 %v1889, 0.0
      %v1922 = vmax.f32 %v1890, 0.0
      %v1923 = vmax.f32 %v1891, 0.0
      %v1924 = vmax.f32 %v1892, 0.0
      %v1925 = vmax.f32 %v1893, 0.0
      %v1926 = vmax.f32 %v1894, 0.0
      %v1927 = vmax.f32 %v1895, 0.0
      %v1928 = vmax.f32 %v1896, 0.0
      %v1929 = vmax.f32 %v1897, 0.0
      %v1930 = vmax.f32 %v1898, 0.0
      %v1931 = vmax.f32 %v1899, 0.0
      %v1932 = vmax.f32 %v1900, 0.0
      %v1933 = vmax.f32 %v1901, 0.0
      %v1934 = vmax.f32 %v1902, 0.0
      %v1935 = vmax.f32 %v1903, 0.0
      %v1936 = vmax.f32 %v1904, 0.0
      %v1937 = vmax.f32 %v1905, 0.0
      %v1938 = vmax.f32 %v1906, 0.0
      %v1939 = vmax.f32 %v1907, 0.0
      %v1940 = vmax.f32 %v1908, 0.0
      %v1941 = vmax.f32 %v1909, 0.0
      %v1942 = vmax.f32 %v1910, 0.0
      %v1943 = vmax.f32 %v1911, 0.0
      %v1944 = vmax.f32 %v1912, 0.0
      %v1945 = vmax.f32 %v1913, 0.0
      %v1946 = vmax.f32 %v1914, 0.0
      %v1947 = vmax.f32 %v1915, 0.0
      %v1948 = vmax.f32 %v1916, 0.0
      %v1949 = vmax.f32 %v1917, 0.0
      %v1950 = vmax.f32 %v1918, 0.0
      %v1951 = vmax.f32 %v1919, 0.0
      %vm1952 = vcmask 523648
      %v1953 = vsel %vm1952, %v1920, -inf
      %vm1954 = vcmask 520576
      %v1955 = vsel %vm1954, %v1921, -inf
      %v1956 = vmax.f32 %v1953, %v1955
      %v1957 = vrot.slane %v1956, 4
      %v1958 = vmax.f32 %v1956, %v1957
      %v1959 = vrot.slane %v1958, 2
      %v1960 = vmax.f32 %v1958, %v1959
      %v1961 = vrot.slane %v1960, 1
      %v1962 = vmax.f32 %v1960, %v1961
      %v1963 = vsel %vm1952, %v1922, -inf
      %v1964 = vsel %vm1954, %v1923, -inf
      %v1965 = vmax.f32 %v1963, %v1964
      %v1966 = vrot.slane %v1965, 4
      %v1967 = vmax.f32 %v1965, %v1966
      %v1968 = vrot.slane %v1967, 2
      %v1969 = vmax.f32 %v1967, %v1968
      %v1970 = vrot.slane %v1969, 1
      %v1971 = vmax.f32 %v1969, %v1970
      %v1972 = vsel %vm1952, %v1924, -inf
      %v1973 = vsel %vm1954, %v1925, -inf
      %v1974 = vmax.f32 %v1972, %v1973
      %v1975 = vrot.slane %v1974, 4
      %v1976 = vmax.f32 %v1974, %v1975
      %v1977 = vrot.slane %v1976, 2
      %v1978 = vmax.f32 %v1976, %v1977
      %v1979 = vrot.slane %v1978, 1
      %v1980 = vmax.f32 %v1978, %v1979
      %v1981 = vsel %vm1952, %v1926, -inf
      %v1982 = vsel %vm1954, %v1927, -inf
      %v1983 = vmax.f32 %v1981, %v1982
      %v1984 = vrot.slane %v1983, 4
      %v1985 = vmax.f32 %v1983, %v1984
      %v1986 = vrot.slane %v1985, 2
      %v1987 = vmax.f32 %v1985, %v1986
      %v1988 = vrot.slane %v1987, 1
      %v1989 = vmax.f32 %v1987, %v1988
      %v1990 = vsel %vm1952, %v1928, -inf
      %v1991 = vsel %vm1954, %v1929, -inf
      %v1992 = vmax.f32 %v1990, %v1991
      %v1993 = vrot.slane %v1992, 4
      %v1994 = vmax.f32 %v1992, %v1993
      %v1995 = vrot.slane %v1994, 2
      %v1996 = vmax.f32 %v1994, %v1995
      %v1997 = vrot.slane %v1996, 1
      %v1998 = vmax.f32 %v1996, %v1997
      %v1999 = vsel %vm1952, %v1930, -inf
      %v2000 = vsel %vm1954, %v1931, -inf
      %v2001 = vmax.f32 %v1999, %v2000
      %v2002 = vrot.slane %v2001, 4
      %v2003 = vmax.f32 %v2001, %v2002
      %v2004 = vrot.slane %v2003, 2
      %v2005 = vmax.f32 %v2003, %v2004
      %v2006 = vrot.slane %v2005, 1
      %v2007 = vmax.f32 %v2005, %v2006
      %v2008 = vsel %vm1952, %v1932, -inf
      %v2009 = vsel %vm1954, %v1933, -inf
      %v2010 = vmax.f32 %v2008, %v2009
      %v2011 = vrot.slane %v2010, 4
      %v2012 = vmax.f32 %v2010, %v2011
      %v2013 = vrot.slane %v2012, 2
      %v2014 = vmax.f32 %v2012, %v2013
      %v2015 = vrot.slane %v2014, 1
      %v2016 = vmax.f32 %v2014, %v2015
      %v2017 = vsel %vm1952, %v1934, -inf
      %v2018 = vsel %vm1954, %v1935, -inf
      %v2019 = vmax.f32 %v2017, %v2018
      %v2020 = vrot.slane %v2019, 4
      %v2021 = vmax.f32 %v2019, %v2020
      %v2022 = vrot.slane %v2021, 2
      %v2023 = vmax.f32 %v2021, %v2022
      %v2024 = vrot.slane %v2023, 1
      %v2025 = vmax.f32 %v2023, %v2024
      %v2026 = vsel %vm1952, %v1936, -inf
      %v2027 = vsel %vm1954, %v1937, -inf
      %v2028 = vmax.f32 %v2026, %v2027
      %v2029 = vrot.slane %v2028, 4
      %v2030 = vmax.f32 %v2028, %v2029
      %v2031 = vrot.slane %v2030, 2
      %v2032 = vmax.f32 %v2030, %v2031
      %v2033 = vrot.slane %v2032, 1
      %v2034 = vmax.f32 %v2032, %v2033
      %v2035 = vsel %vm1952, %v1938, -inf
      %v2036 = vsel %vm1954, %v1939, -inf
      %v2037 = vmax.f32 %v2035, %v2036
      %v2038 = vrot.slane %v2037, 4
      %v2039 = vmax.f32 %v2037, %v2038
      %v2040 = vrot.slane %v2039, 2
      %v2041 = vmax.f32 %v2039, %v2040
      %v2042 = vrot.slane %v2041, 1
      %v2043 = vmax.f32 %v2041, %v2042
      %v2044 = vsel %vm1952, %v1940, -inf
      %v2045 = vsel %vm1954, %v1941, -inf
      %v2046 = vmax.f32 %v2044, %v2045
      %v2047 = vrot.slane %v2046, 4
      %v2048 = vmax.f32 %v2046, %v2047
      %v2049 = vrot.slane %v2048, 2
      %v2050 = vmax.f32 %v2048, %v2049
      %v2051 = vrot.slane %v2050, 1
      %v2052 = vmax.f32 %v2050, %v2051
      %v2053 = vsel %vm1952, %v1942, -inf
      %v2054 = vsel %vm1954, %v1943, -inf
      %v2055 = vmax.f32 %v2053, %v2054
      %v2056 = vrot.slane %v2055, 4
      %v2057 = vmax.f32 %v2055, %v2056
      %v2058 = vrot.slane %v2057, 2
      %v2059 = vmax.f32 %v2057, %v2058
      %v2060 = vrot.slane %v2059, 1
      %v2061 = vmax.f32 %v2059, %v2060
      %v2062 = vsel %vm1952, %v1944, -inf
      %v2063 = vsel %vm1954, %v1945, -inf
      %v2064 = vmax.f32 %v2062, %v2063
      %v2065 = vrot.slane %v2064, 4
      %v2066 = vmax.f32 %v2064, %v2065
      %v2067 = vrot.slane %v2066, 2
      %v2068 = vmax.f32 %v2066, %v2067
      %v2069 = vrot.slane %v2068, 1
      %v2070 = vmax.f32 %v2068, %v2069
      %v2071 = vsel %vm1952, %v1946, -inf
      %v2072 = vsel %vm1954, %v1947, -inf
      %v2073 = vmax.f32 %v2071, %v2072
      %v2074 = vrot.slane %v2073, 4
      %v2075 = vmax.f32 %v2073, %v2074
      %v2076 = vrot.slane %v2075, 2
      %v2077 = vmax.f32 %v2075, %v2076
      %v2078 = vrot.slane %v2077, 1
      %v2079 = vmax.f32 %v2077, %v2078
      %v2080 = vsel %vm1952, %v1948, -inf
      %v2081 = vsel %vm1954, %v1949, -inf
      %v2082 = vmax.f32 %v2080, %v2081
      %v2083 = vrot.slane %v2082, 4
      %v2084 = vmax.f32 %v2082, %v2083
      %v2085 = vrot.slane %v2084, 2
      %v2086 = vmax.f32 %v2084, %v2085
      %v2087 = vrot.slane %v2086, 1
      %v2088 = vmax.f32 %v2086, %v2087
      %v2089 = vsel %vm1952, %v1950, -inf
      %v2090 = vsel %vm1954, %v1951, -inf
      %v2091 = vmax.f32 %v2089, %v2090
      %v2092 = vrot.slane %v2091, 4
      %v2093 = vmax.f32 %v2091, %v2092
      %v2094 = vrot.slane %v2093, 2
      %v2095 = vmax.f32 %v2093, %v2094
      %v2096 = vrot.slane %v2095, 1
      %v2097 = vmax.f32 %v2095, %v2096
      %v2130 = vrot.slane %v914, 1
      %v2131 = vrot.slane %v920, 1
      %v2132 = vsel %vm1135, %v2130, %v2131
      %v2133 = vrot.slane %v926, 1
      %v2134 = vrot.slane %v932, 1
      %v2135 = vsel %vm1135, %v2133, %v2134
      %v2136 = vrot.slane %v938, 1
      %v2137 = vrot.slane %v944, 1
      %v2138 = vsel %vm1135, %v2136, %v2137
      %v2139 = vrot.slane %v950, 1
      %v2140 = vrot.slane %v956, 1
      %v2141 = vsel %vm1135, %v2139, %v2140
      %v2142 = vrot.slane %v962, 1
      %v2143 = vrot.slane %v968, 1
      %v2144 = vsel %vm1135, %v2142, %v2143
      %v2145 = vrot.slane %v974, 1
      %v2146 = vrot.slane %v980, 1
      %v2147 = vsel %vm1135, %v2145, %v2146
      %v2148 = vrot.slane %v986, 1
      %v2149 = vrot.slane %v992, 1
      %v2150 = vsel %vm1135, %v2148, %v2149
      %v2151 = vrot.slane %v998, 1
      %v2152 = vrot.slane %v1004, 1
      %v2153 = vsel %vm1135, %v2151, %v2152
      %v2154 = vrot.slane %v1010, 1
      %v2155 = vrot.slane %v1016, 1
      %v2156 = vsel %vm1135, %v2154, %v2155
      %v2157 = vrot.slane %v1022, 1
      %v2158 = vrot.slane %v1028, 1
      %v2159 = vsel %vm1135, %v2157, %v2158
      %v2160 = vrot.slane %v1034, 1
      %v2161 = vrot.slane %v1040, 1
      %v2162 = vsel %vm1135, %v2160, %v2161
      %v2163 = vrot.slane %v1046, 1
      %v2164 = vrot.slane %v1052, 1
      %v2165 = vsel %vm1135, %v2163, %v2164
      %v2166 = vrot.slane %v1058, 1
      %v2167 = vrot.slane %v1064, 1
      %v2168 = vsel %vm1135, %v2166, %v2167
      %v2169 = vrot.slane %v1070, 1
      %v2170 = vrot.slane %v1076, 1
      %v2171 = vsel %vm1135, %v2169, %v2170
      %v2172 = vrot.slane %v1082, 1
      %v2173 = vrot.slane %v1088, 1
      %v2174 = vsel %vm1135, %v2172, %v2173
      %v2175 = vrot.slane %v1094, 1
      %v2176 = vrot.slane %v1100, 1
      %v2177 = vsel %vm1135, %v2175, %v2176
      %2178 = vrot.lane.b32.xlu0 %v2132, 112
      %v2179 = vpop.permute.xlu0 %2178
      %2180 = vrot.lane.b32.xlu0 %v2131, 112
      %v2181 = vpop.permute.xlu0 %2180
      %2182 = vrot.lane.b32.xlu0 %v2135, 112
      %v2183 = vpop.permute.xlu0 %2182
      %2184 = vrot.lane.b32.xlu0 %v2134, 112
      %v2185 = vpop.permute.xlu0 %2184
      %2186 = vrot.lane.b32.xlu0 %v2138, 112
      %v2187 = vpop.permute.xlu0 %2186
      %2188 = vrot.lane.b32.xlu0 %v2137, 112
      %v2189 = vpop.permute.xlu0 %2188
      %2190 = vrot.lane.b32.xlu0 %v2141, 112
      %v2191 = vpop.permute.xlu0 %2190
      %2192 = vrot.lane.b32.xlu0 %v2140, 112
      %v2193 = vpop.permute.xlu0 %2192
      %2194 = vrot.lane.b32.xlu0 %v2144, 112
      %v2195 = vpop.permute.xlu0 %2194
      %2196 = vrot.lane.b32.xlu0 %v2143, 112
      %v2197 = vpop.permute.xlu0 %2196
      %2198 = vrot.lane.b32.xlu0 %v2147, 112
      %v2199 = vpop.permute.xlu0 %2198
      %2200 = vrot.lane.b32.xlu0 %v2146, 112
      %v2201 = vpop.permute.xlu0 %2200
      %2202 = vrot.lane.b32.xlu0 %v2150, 112
      %v2203 = vpop.permute.xlu0 %2202
      %2204 = vrot.lane.b32.xlu0 %v2149, 112
      %v2205 = vpop.permute.xlu0 %2204
      %2206 = vrot.lane.b32.xlu0 %v2153, 112
      %v2207 = vpop.permute.xlu0 %2206
      %2208 = vrot.lane.b32.xlu0 %v2152, 112
      %v2209 = vpop.permute.xlu0 %2208
      %2210 = vrot.lane.b32.xlu0 %v2156, 112
      %v2211 = vpop.permute.xlu0 %2210
      %2212 = vrot.lane.b32.xlu0 %v2155, 112
      %v2213 = vpop.permute.xlu0 %2212
      %2214 = vrot.lane.b32.xlu0 %v2159, 112
      %v2215 = vpop.permute.xlu0 %2214
      %2216 = vrot.lane.b32.xlu0 %v2158, 112
      %v2217 = vpop.permute.xlu0 %2216
      %2218 = vrot.lane.b32.xlu0 %v2162, 112
      %v2219 = vpop.permute.xlu0 %2218
      %2220 = vrot.lane.b32.xlu0 %v2161, 112
      %v2221 = vpop.permute.xlu0 %2220
      %2222 = vrot.lane.b32.xlu0 %v2165, 112
      %v2223 = vpop.permute.xlu0 %2222
      %2224 = vrot.lane.b32.xlu0 %v2164, 112
      %v2225 = vpop.permute.xlu0 %2224
      %2226 = vrot.lane.b32.xlu0 %v2168, 112
      %v2227 = vpop.permute.xlu0 %2226
      %2228 = vrot.lane.b32.xlu0 %v2167, 112
      %v2229 = vpop.permute.xlu0 %2228
      %2230 = vrot.lane.b32.xlu0 %v2171, 112
      %v2231 = vpop.permute.xlu0 %2230
      %2232 = vrot.lane.b32.xlu0 %v2170, 112
      %v2233 = vpop.permute.xlu0 %2232
      %2234 = vrot.lane.b32.xlu0 %v2174, 112
      %v2235 = vpop.permute.xlu0 %2234
      %2236 = vrot.lane.b32.xlu0 %v2173, 112
      %v2237 = vpop.permute.xlu0 %2236
      %2238 = vrot.lane.b32.xlu0 %v2177, 112
      %v2239 = vpop.permute.xlu0 %2238
      %2240 = vrot.lane.b32.xlu0 %v2176, 112
      %v2241 = vpop.permute.xlu0 %2240
      %v2274 = vadd.f32 %v912, %v2179
      %v2275 = vadd.f32 %v918, %v2181
      %v2276 = vadd.f32 %v924, %v2183
      %v2277 = vadd.f32 %v930, %v2185
      %v2278 = vadd.f32 %v936, %v2187
      %v2279 = vadd.f32 %v942, %v2189
      %v2280 = vadd.f32 %v948, %v2191
      %v2281 = vadd.f32 %v954, %v2193
      %v2282 = vadd.f32 %v960, %v2195
      %v2283 = vadd.f32 %v966, %v2197
      %v2284 = vadd.f32 %v972, %v2199
      %v2285 = vadd.f32 %v978, %v2201
      %v2286 = vadd.f32 %v984, %v2203
      %v2287 = vadd.f32 %v990, %v2205
      %v2288 = vadd.f32 %v996, %v2207
      %v2289 = vadd.f32 %v1002, %v2209
      %v2290 = vadd.f32 %v1008, %v2211
      %v2291 = vadd.f32 %v1014, %v2213
      %v2292 = vadd.f32 %v1020, %v2215
      %v2293 = vadd.f32 %v1026, %v2217
      %v2294 = vadd.f32 %v1032, %v2219
      %v2295 = vadd.f32 %v1038, %v2221
      %v2296 = vadd.f32 %v1044, %v2223
      %v2297 = vadd.f32 %v1050, %v2225
      %v2298 = vadd.f32 %v1056, %v2227
      %v2299 = vadd.f32 %v1062, %v2229
      %v2300 = vadd.f32 %v1068, %v2231
      %v2301 = vadd.f32 %v1074, %v2233
      %v2302 = vadd.f32 %v1080, %v2235
      %v2303 = vadd.f32 %v1086, %v2237
      %v2304 = vadd.f32 %v1092, %v2239
      %v2305 = vadd.f32 %v1098, %v2241
      %v2306 = vrot.slane %v914, 2
      %v2307 = vrot.slane %v920, 2
      %v2308 = vsel %vm1312, %v2306, %v2307
      %v2309 = vrot.slane %v926, 2
      %v2310 = vrot.slane %v932, 2
      %v2311 = vsel %vm1312, %v2309, %v2310
      %v2312 = vrot.slane %v938, 2
      %v2313 = vrot.slane %v944, 2
      %v2314 = vsel %vm1312, %v2312, %v2313
      %v2315 = vrot.slane %v950, 2
      %v2316 = vrot.slane %v956, 2
      %v2317 = vsel %vm1312, %v2315, %v2316
      %v2318 = vrot.slane %v962, 2
      %v2319 = vrot.slane %v968, 2
      %v2320 = vsel %vm1312, %v2318, %v2319
      %v2321 = vrot.slane %v974, 2
      %v2322 = vrot.slane %v980, 2
      %v2323 = vsel %vm1312, %v2321, %v2322
      %v2324 = vrot.slane %v986, 2
      %v2325 = vrot.slane %v992, 2
      %v2326 = vsel %vm1312, %v2324, %v2325
      %v2327 = vrot.slane %v998, 2
      %v2328 = vrot.slane %v1004, 2
      %v2329 = vsel %vm1312, %v2327, %v2328
      %v2330 = vrot.slane %v1010, 2
      %v2331 = vrot.slane %v1016, 2
      %v2332 = vsel %vm1312, %v2330, %v2331
      %v2333 = vrot.slane %v1022, 2
      %v2334 = vrot.slane %v1028, 2
      %v2335 = vsel %vm1312, %v2333, %v2334
      %v2336 = vrot.slane %v1034, 2
      %v2337 = vrot.slane %v1040, 2
      %v2338 = vsel %vm1312, %v2336, %v2337
      %v2339 = vrot.slane %v1046, 2
      %v2340 = vrot.slane %v1052, 2
      %v2341 = vsel %vm1312, %v2339, %v2340
      %v2342 = vrot.slane %v1058, 2
      %v2343 = vrot.slane %v1064, 2
      %v2344 = vsel %vm1312, %v2342, %v2343
      %v2345 = vrot.slane %v1070, 2
      %v2346 = vrot.slane %v1076, 2
      %v2347 = vsel %vm1312, %v2345, %v2346
      %v2348 = vrot.slane %v1082, 2
      %v2349 = vrot.slane %v1088, 2
      %v2350 = vsel %vm1312, %v2348, %v2349
      %v2351 = vrot.slane %v1094, 2
      %v2352 = vrot.slane %v1100, 2
      %v2353 = vsel %vm1312, %v2351, %v2352
      %2354 = vrot.lane.b32.xlu0 %v2308, 96
      %v2355 = vpop.permute.xlu0 %2354
      %2356 = vrot.lane.b32.xlu0 %v2307, 96
      %v2357 = vpop.permute.xlu0 %2356
      %2358 = vrot.lane.b32.xlu0 %v2311, 96
      %v2359 = vpop.permute.xlu0 %2358
      %2360 = vrot.lane.b32.xlu0 %v2310, 96
      %v2361 = vpop.permute.xlu0 %2360
      %2362 = vrot.lane.b32.xlu0 %v2314, 96
      %v2363 = vpop.permute.xlu0 %2362
      %2364 = vrot.lane.b32.xlu0 %v2313, 96
      %v2365 = vpop.permute.xlu0 %2364
      %2366 = vrot.lane.b32.xlu0 %v2317, 96
      %v2367 = vpop.permute.xlu0 %2366
      %2368 = vrot.lane.b32.xlu0 %v2316, 96
      %v2369 = vpop.permute.xlu0 %2368
      %2370 = vrot.lane.b32.xlu0 %v2320, 96
      %v2371 = vpop.permute.xlu0 %2370
      %2372 = vrot.lane.b32.xlu0 %v2319, 96
      %v2373 = vpop.permute.xlu0 %2372
      %2374 = vrot.lane.b32.xlu0 %v2323, 96
      %v2375 = vpop.permute.xlu0 %2374
      %2376 = vrot.lane.b32.xlu0 %v2322, 96
      %v2377 = vpop.permute.xlu0 %2376
      %2378 = vrot.lane.b32.xlu0 %v2326, 96
      %v2379 = vpop.permute.xlu0 %2378
      %2380 = vrot.lane.b32.xlu0 %v2325, 96
      %v2381 = vpop.permute.xlu0 %2380
      %2382 = vrot.lane.b32.xlu0 %v2329, 96
      %v2383 = vpop.permute.xlu0 %2382
      %2384 = vrot.lane.b32.xlu0 %v2328, 96
      %v2385 = vpop.permute.xlu0 %2384
      %2386 = vrot.lane.b32.xlu0 %v2332, 96
      %v2387 = vpop.permute.xlu0 %2386
      %2388 = vrot.lane.b32.xlu0 %v2331, 96
      %v2389 = vpop.permute.xlu0 %2388
      %2390 = vrot.lane.b32.xlu0 %v2335, 96
      %v2391 = vpop.permute.xlu0 %2390
      %2392 = vrot.lane.b32.xlu0 %v2334, 96
      %v2393 = vpop.permute.xlu0 %2392
      %2394 = vrot.lane.b32.xlu0 %v2338, 96
      %v2395 = vpop.permute.xlu0 %2394
      %2396 = vrot.lane.b32.xlu0 %v2337, 96
      %v2397 = vpop.permute.xlu0 %2396
      %2398 = vrot.lane.b32.xlu0 %v2341, 96
      %v2399 = vpop.permute.xlu0 %2398
      %2400 = vrot.lane.b32.xlu0 %v2340, 96
      %v2401 = vpop.permute.xlu0 %2400
      %2402 = vrot.lane.b32.xlu0 %v2344, 96
      %v2403 = vpop.permute.xlu0 %2402
      %2404 = vrot.lane.b32.xlu0 %v2343, 96
      %v2405 = vpop.permute.xlu0 %2404
      %2406 = vrot.lane.b32.xlu0 %v2347, 96
      %v2407 = vpop.permute.xlu0 %2406
      %2408 = vrot.lane.b32.xlu0 %v2346, 96
      %v2409 = vpop.permute.xlu0 %2408
      %2410 = vrot.lane.b32.xlu0 %v2350, 96
      %v2411 = vpop.permute.xlu0 %2410
      %2412 = vrot.lane.b32.xlu0 %v2349, 96
      %v2413 = vpop.permute.xlu0 %2412
      %2414 = vrot.lane.b32.xlu0 %v2353, 96
      %v2415 = vpop.permute.xlu0 %2414
      %2416 = vrot.lane.b32.xlu0 %v2352, 96
      %v2417 = vpop.permute.xlu0 %2416
      %v2450 = vadd.f32 %v2274, %v2355
      %v2451 = vadd.f32 %v2275, %v2357
      %v2452 = vadd.f32 %v2276, %v2359
      %v2453 = vadd.f32 %v2277, %v2361
      %v2454 = vadd.f32 %v2278, %v2363
      %v2455 = vadd.f32 %v2279, %v2365
      %v2456 = vadd.f32 %v2280, %v2367
      %v2457 = vadd.f32 %v2281, %v2369
      %v2458 = vadd.f32 %v2282, %v2371
      %v2459 = vadd.f32 %v2283, %v2373
      %v2460 = vadd.f32 %v2284, %v2375
      %v2461 = vadd.f32 %v2285, %v2377
      %v2462 = vadd.f32 %v2286, %v2379
      %v2463 = vadd.f32 %v2287, %v2381
      %v2464 = vadd.f32 %v2288, %v2383
      %v2465 = vadd.f32 %v2289, %v2385
      %v2466 = vadd.f32 %v2290, %v2387
      %v2467 = vadd.f32 %v2291, %v2389
      %v2468 = vadd.f32 %v2292, %v2391
      %v2469 = vadd.f32 %v2293, %v2393
      %v2470 = vadd.f32 %v2294, %v2395
      %v2471 = vadd.f32 %v2295, %v2397
      %v2472 = vadd.f32 %v2296, %v2399
      %v2473 = vadd.f32 %v2297, %v2401
      %v2474 = vadd.f32 %v2298, %v2403
      %v2475 = vadd.f32 %v2299, %v2405
      %v2476 = vadd.f32 %v2300, %v2407
      %v2477 = vadd.f32 %v2301, %v2409
      %v2478 = vadd.f32 %v2302, %v2411
      %v2479 = vadd.f32 %v2303, %v2413
      %v2480 = vadd.f32 %v2304, %v2415
      %v2481 = vadd.f32 %v2305, %v2417
      %v2482 = vrot.slane %v914, 3
      %v2483 = vrot.slane %v920, 3
      %v2484 = vsel %vm1703, %v2482, %v2483
      %v2485 = vrot.slane %v926, 3
      %v2486 = vrot.slane %v932, 3
      %v2487 = vsel %vm1703, %v2485, %v2486
      %v2488 = vrot.slane %v938, 3
      %v2489 = vrot.slane %v944, 3
      %v2490 = vsel %vm1703, %v2488, %v2489
      %v2491 = vrot.slane %v950, 3
      %v2492 = vrot.slane %v956, 3
      %v2493 = vsel %vm1703, %v2491, %v2492
      %v2494 = vrot.slane %v962, 3
      %v2495 = vrot.slane %v968, 3
      %v2496 = vsel %vm1703, %v2494, %v2495
      %v2497 = vrot.slane %v974, 3
      %v2498 = vrot.slane %v980, 3
      %v2499 = vsel %vm1703, %v2497, %v2498
      %v2500 = vrot.slane %v986, 3
      %v2501 = vrot.slane %v992, 3
      %v2502 = vsel %vm1703, %v2500, %v2501
      %v2503 = vrot.slane %v998, 3
      %v2504 = vrot.slane %v1004, 3
      %v2505 = vsel %vm1703, %v2503, %v2504
      %v2506 = vrot.slane %v1010, 3
      %v2507 = vrot.slane %v1016, 3
      %v2508 = vsel %vm1703, %v2506, %v2507
      %v2509 = vrot.slane %v1022, 3
      %v2510 = vrot.slane %v1028, 3
      %v2511 = vsel %vm1703, %v2509, %v2510
      %v2512 = vrot.slane %v1034, 3
      %v2513 = vrot.slane %v1040, 3
      %v2514 = vsel %vm1703, %v2512, %v2513
      %v2515 = vrot.slane %v1046, 3
      %v2516 = vrot.slane %v1052, 3
      %v2517 = vsel %vm1703, %v2515, %v2516
      %v2518 = vrot.slane %v1058, 3
      %v2519 = vrot.slane %v1064, 3
      %v2520 = vsel %vm1703, %v2518, %v2519
      %v2521 = vrot.slane %v1070, 3
      %v2522 = vrot.slane %v1076, 3
      %v2523 = vsel %vm1703, %v2521, %v2522
      %v2524 = vrot.slane %v1082, 3
      %v2525 = vrot.slane %v1088, 3
      %v2526 = vsel %vm1703, %v2524, %v2525
      %v2527 = vrot.slane %v1094, 3
      %v2528 = vrot.slane %v1100, 3
      %v2529 = vsel %vm1703, %v2527, %v2528
      %2530 = vrot.lane.b32.xlu0 %v2484, 80
      %v2531 = vpop.permute.xlu0 %2530
      %2532 = vrot.lane.b32.xlu0 %v2483, 80
      %v2533 = vpop.permute.xlu0 %2532
      %2534 = vrot.lane.b32.xlu0 %v2487, 80
      %v2535 = vpop.permute.xlu0 %2534
      %2536 = vrot.lane.b32.xlu0 %v2486, 80
      %v2537 = vpop.permute.xlu0 %2536
      %2538 = vrot.lane.b32.xlu0 %v2490, 80
      %v2539 = vpop.permute.xlu0 %2538
      %2540 = vrot.lane.b32.xlu0 %v2489, 80
      %v2541 = vpop.permute.xlu0 %2540
      %2542 = vrot.lane.b32.xlu0 %v2493, 80
      %v2543 = vpop.permute.xlu0 %2542
      %2544 = vrot.lane.b32.xlu0 %v2492, 80
      %v2545 = vpop.permute.xlu0 %2544
      %2546 = vrot.lane.b32.xlu0 %v2496, 80
      %v2547 = vpop.permute.xlu0 %2546
      %2548 = vrot.lane.b32.xlu0 %v2495, 80
      %v2549 = vpop.permute.xlu0 %2548
      %2550 = vrot.lane.b32.xlu0 %v2499, 80
      %v2551 = vpop.permute.xlu0 %2550
      %2552 = vrot.lane.b32.xlu0 %v2498, 80
      %v2553 = vpop.permute.xlu0 %2552
      %2554 = vrot.lane.b32.xlu0 %v2502, 80
      %v2555 = vpop.permute.xlu0 %2554
      %2556 = vrot.lane.b32.xlu0 %v2501, 80
      %v2557 = vpop.permute.xlu0 %2556
      %2558 = vrot.lane.b32.xlu0 %v2505, 80
      %v2559 = vpop.permute.xlu0 %2558
      %2560 = vrot.lane.b32.xlu0 %v2504, 80
      %v2561 = vpop.permute.xlu0 %2560
      %2562 = vrot.lane.b32.xlu0 %v2508, 80
      %v2563 = vpop.permute.xlu0 %2562
      %2564 = vrot.lane.b32.xlu0 %v2507, 80
      %v2565 = vpop.permute.xlu0 %2564
      %2566 = vrot.lane.b32.xlu0 %v2511, 80
      %v2567 = vpop.permute.xlu0 %2566
      %2568 = vrot.lane.b32.xlu0 %v2510, 80
      %v2569 = vpop.permute.xlu0 %2568
      %2570 = vrot.lane.b32.xlu0 %v2514, 80
      %v2571 = vpop.permute.xlu0 %2570
      %2572 = vrot.lane.b32.xlu0 %v2513, 80
      %v2573 = vpop.permute.xlu0 %2572
      %2574 = vrot.lane.b32.xlu0 %v2517, 80
      %v2575 = vpop.permute.xlu0 %2574
      %2576 = vrot.lane.b32.xlu0 %v2516, 80
      %v2577 = vpop.permute.xlu0 %2576
      %2578 = vrot.lane.b32.xlu0 %v2520, 80
      %v2579 = vpop.permute.xlu0 %2578
      %2580 = vrot.lane.b32.xlu0 %v2519, 80
      %v2581 = vpop.permute.xlu0 %2580
      %2582 = vrot.lane.b32.xlu0 %v2523, 80
      %v2583 = vpop.permute.xlu0 %2582
      %2584 = vrot.lane.b32.xlu0 %v2522, 80
      %v2585 = vpop.permute.xlu0 %2584
      %2586 = vrot.lane.b32.xlu0 %v2526, 80
      %v2587 = vpop.permute.xlu0 %2586
      %2588 = vrot.lane.b32.xlu0 %v2525, 80
      %v2589 = vpop.permute.xlu0 %2588
      %2590 = vrot.lane.b32.xlu0 %v2529, 80
      %v2591 = vpop.permute.xlu0 %2590
      %2592 = vrot.lane.b32.xlu0 %v2528, 80
      %v2593 = vpop.permute.xlu0 %2592
      %v2626 = vadd.f32 %v2450, %v2531
      %v2627 = vadd.f32 %v2451, %v2533
      %v2628 = vadd.f32 %v2452, %v2535
      %v2629 = vadd.f32 %v2453, %v2537
      %v2630 = vadd.f32 %v2454, %v2539
      %v2631 = vadd.f32 %v2455, %v2541
      %v2632 = vadd.f32 %v2456, %v2543
      %v2633 = vadd.f32 %v2457, %v2545
      %v2634 = vadd.f32 %v2458, %v2547
      %v2635 = vadd.f32 %v2459, %v2549
      %v2636 = vadd.f32 %v2460, %v2551
      %v2637 = vadd.f32 %v2461, %v2553
      %v2638 = vadd.f32 %v2462, %v2555
      %v2639 = vadd.f32 %v2463, %v2557
      %v2640 = vadd.f32 %v2464, %v2559
      %v2641 = vadd.f32 %v2465, %v2561
      %v2642 = vadd.f32 %v2466, %v2563
      %v2643 = vadd.f32 %v2467, %v2565
      %v2644 = vadd.f32 %v2468, %v2567
      %v2645 = vadd.f32 %v2469, %v2569
      %v2646 = vadd.f32 %v2470, %v2571
      %v2647 = vadd.f32 %v2471, %v2573
      %v2648 = vadd.f32 %v2472, %v2575
      %v2649 = vadd.f32 %v2473, %v2577
      %v2650 = vadd.f32 %v2474, %v2579
      %v2651 = vadd.f32 %v2475, %v2581
      %v2652 = vadd.f32 %v2476, %v2583
      %v2653 = vadd.f32 %v2477, %v2585
      %v2654 = vadd.f32 %v2478, %v2587
      %v2655 = vadd.f32 %v2479, %v2589
      %v2656 = vadd.f32 %v2480, %v2591
      %v2657 = vadd.f32 %v2481, %v2593
      %vm2658 = vcmask 1043456
      %v2659 = vrot.slane %v914, 4
      %v2660 = vrot.slane %v920, 4
      %v2661 = vsel %vm2658, %v2659, %v2660
      %v2662 = vrot.slane %v926, 4
      %v2663 = vrot.slane %v932, 4
      %v2664 = vsel %vm2658, %v2662, %v2663
      %v2665 = vrot.slane %v938, 4
      %v2666 = vrot.slane %v944, 4
      %v2667 = vsel %vm2658, %v2665, %v2666
      %v2668 = vrot.slane %v950, 4
      %v2669 = vrot.slane %v956, 4
      %v2670 = vsel %vm2658, %v2668, %v2669
      %v2671 = vrot.slane %v962, 4
      %v2672 = vrot.slane %v968, 4
      %v2673 = vsel %vm2658, %v2671, %v2672
      %v2674 = vrot.slane %v974, 4
      %v2675 = vrot.slane %v980, 4
      %v2676 = vsel %vm2658, %v2674, %v2675
      %v2677 = vrot.slane %v986, 4
      %v2678 = vrot.slane %v992, 4
      %v2679 = vsel %vm2658, %v2677, %v2678
      %v2680 = vrot.slane %v998, 4
      %v2681 = vrot.slane %v1004, 4
      %v2682 = vsel %vm2658, %v2680, %v2681
      %v2683 = vrot.slane %v1010, 4
      %v2684 = vrot.slane %v1016, 4
      %v2685 = vsel %vm2658, %v2683, %v2684
      %v2686 = vrot.slane %v1022, 4
      %v2687 = vrot.slane %v1028, 4
      %v2688 = vsel %vm2658, %v2686, %v2687
      %v2689 = vrot.slane %v1034, 4
      %v2690 = vrot.slane %v1040, 4
      %v2691 = vsel %vm2658, %v2689, %v2690
      %v2692 = vrot.slane %v1046, 4
      %v2693 = vrot.slane %v1052, 4
      %v2694 = vsel %vm2658, %v2692, %v2693
      %v2695 = vrot.slane %v1058, 4
      %v2696 = vrot.slane %v1064, 4
      %v2697 = vsel %vm2658, %v2695, %v2696
      %v2698 = vrot.slane %v1070, 4
      %v2699 = vrot.slane %v1076, 4
      %v2700 = vsel %vm2658, %v2698, %v2699
      %v2701 = vrot.slane %v1082, 4
      %v2702 = vrot.slane %v1088, 4
      %v2703 = vsel %vm2658, %v2701, %v2702
      %v2704 = vrot.slane %v1094, 4
      %v2705 = vrot.slane %v1100, 4
      %v2706 = vsel %vm2658, %v2704, %v2705
      %2707 = vrot.lane.b32.xlu0 %v2661, 64
      %v2708 = vpop.permute.xlu0 %2707
      %2709 = vrot.lane.b32.xlu0 %v2660, 64
      %v2710 = vpop.permute.xlu0 %2709
      %2711 = vrot.lane.b32.xlu0 %v2664, 64
      %v2712 = vpop.permute.xlu0 %2711
      %2713 = vrot.lane.b32.xlu0 %v2663, 64
      %v2714 = vpop.permute.xlu0 %2713
      %2715 = vrot.lane.b32.xlu0 %v2667, 64
      %v2716 = vpop.permute.xlu0 %2715
      %2717 = vrot.lane.b32.xlu0 %v2666, 64
      %v2718 = vpop.permute.xlu0 %2717
      %2719 = vrot.lane.b32.xlu0 %v2670, 64
      %v2720 = vpop.permute.xlu0 %2719
      %2721 = vrot.lane.b32.xlu0 %v2669, 64
      %v2722 = vpop.permute.xlu0 %2721
      %2723 = vrot.lane.b32.xlu0 %v2673, 64
      %v2724 = vpop.permute.xlu0 %2723
      %2725 = vrot.lane.b32.xlu0 %v2672, 64
      %v2726 = vpop.permute.xlu0 %2725
      %2727 = vrot.lane.b32.xlu0 %v2676, 64
      %v2728 = vpop.permute.xlu0 %2727
      %2729 = vrot.lane.b32.xlu0 %v2675, 64
      %v2730 = vpop.permute.xlu0 %2729
      %2731 = vrot.lane.b32.xlu0 %v2679, 64
      %v2732 = vpop.permute.xlu0 %2731
      %2733 = vrot.lane.b32.xlu0 %v2678, 64
      %v2734 = vpop.permute.xlu0 %2733
      %2735 = vrot.lane.b32.xlu0 %v2682, 64
      %v2736 = vpop.permute.xlu0 %2735
      %2737 = vrot.lane.b32.xlu0 %v2681, 64
      %v2738 = vpop.permute.xlu0 %2737
      %2739 = vrot.lane.b32.xlu0 %v2685, 64
      %v2740 = vpop.permute.xlu0 %2739
      %2741 = vrot.lane.b32.xlu0 %v2684, 64
      %v2742 = vpop.permute.xlu0 %2741
      %2743 = vrot.lane.b32.xlu0 %v2688, 64
      %v2744 = vpop.permute.xlu0 %2743
      %2745 = vrot.lane.b32.xlu0 %v2687, 64
      %v2746 = vpop.permute.xlu0 %2745
      %2747 = vrot.lane.b32.xlu0 %v2691, 64
      %v2748 = vpop.permute.xlu0 %2747
      %2749 = vrot.lane.b32.xlu0 %v2690, 64
      %v2750 = vpop.permute.xlu0 %2749
      %2751 = vrot.lane.b32.xlu0 %v2694, 64
      %v2752 = vpop.permute.xlu0 %2751
      %2753 = vrot.lane.b32.xlu0 %v2693, 64
      %v2754 = vpop.permute.xlu0 %2753
      %2755 = vrot.lane.b32.xlu0 %v2697, 64
      %v2756 = vpop.permute.xlu0 %2755
      %2757 = vrot.lane.b32.xlu0 %v2696, 64
      %v2758 = vpop.permute.xlu0 %2757
      %2759 = vrot.lane.b32.xlu0 %v2700, 64
      %v2760 = vpop.permute.xlu0 %2759
      %2761 = vrot.lane.b32.xlu0 %v2699, 64
      %v2762 = vpop.permute.xlu0 %2761
      %2763 = vrot.lane.b32.xlu0 %v2703, 64
      %v2764 = vpop.permute.xlu0 %2763
      %2765 = vrot.lane.b32.xlu0 %v2702, 64
      %v2766 = vpop.permute.xlu0 %2765
      %2767 = vrot.lane.b32.xlu0 %v2706, 64
      %v2768 = vpop.permute.xlu0 %2767
      %2769 = vrot.lane.b32.xlu0 %v2705, 64
      %v2770 = vpop.permute.xlu0 %2769
      %v2803 = vadd.f32 %v2626, %v2708
      %v2804 = vadd.f32 %v2627, %v2710
      %v2805 = vadd.f32 %v2628, %v2712
      %v2806 = vadd.f32 %v2629, %v2714
      %v2807 = vadd.f32 %v2630, %v2716
      %v2808 = vadd.f32 %v2631, %v2718
      %v2809 = vadd.f32 %v2632, %v2720
      %v2810 = vadd.f32 %v2633, %v2722
      %v2811 = vadd.f32 %v2634, %v2724
      %v2812 = vadd.f32 %v2635, %v2726
      %v2813 = vadd.f32 %v2636, %v2728
      %v2814 = vadd.f32 %v2637, %v2730
      %v2815 = vadd.f32 %v2638, %v2732
      %v2816 = vadd.f32 %v2639, %v2734
      %v2817 = vadd.f32 %v2640, %v2736
      %v2818 = vadd.f32 %v2641, %v2738
      %v2819 = vadd.f32 %v2642, %v2740
      %v2820 = vadd.f32 %v2643, %v2742
      %v2821 = vadd.f32 %v2644, %v2744
      %v2822 = vadd.f32 %v2645, %v2746
      %v2823 = vadd.f32 %v2646, %v2748
      %v2824 = vadd.f32 %v2647, %v2750
      %v2825 = vadd.f32 %v2648, %v2752
      %v2826 = vadd.f32 %v2649, %v2754
      %v2827 = vadd.f32 %v2650, %v2756
      %v2828 = vadd.f32 %v2651, %v2758
      %v2829 = vadd.f32 %v2652, %v2760
      %v2830 = vadd.f32 %v2653, %v2762
      %v2831 = vadd.f32 %v2654, %v2764
      %v2832 = vadd.f32 %v2655, %v2766
      %v2833 = vadd.f32 %v2656, %v2768
      %v2834 = vadd.f32 %v2657, %v2770
      %v2835 = vlaneseq
      %v2836 = vshrl.u32 %v2835, 7
      %v2837 = vsub.s32 2, %v2836
      %v2838 = vrot.slane %v1102, %v2837
      %2840 = vrot.lane.b32.xlu0 %v2838, 112
      %v2841 = vpop.permute.xlu0 %2840
      %v2843 = vadd.f32 %v2803, %v2841
      %v2844 = vadd.f32 %v2804, %v2841
      %v2845 = vadd.f32 %v2805, %v2841
      %v2846 = vadd.f32 %v2806, %v2841
      %v2847 = vadd.f32 %v2807, %v2841
      %v2848 = vadd.f32 %v2808, %v2841
      %v2849 = vadd.f32 %v2809, %v2841
      %v2850 = vadd.f32 %v2810, %v2841
      %v2851 = vadd.f32 %v2811, %v2841
      %v2852 = vadd.f32 %v2812, %v2841
      %v2853 = vadd.f32 %v2813, %v2841
      %v2854 = vadd.f32 %v2814, %v2841
      %v2855 = vadd.f32 %v2815, %v2841
      %v2856 = vadd.f32 %v2816, %v2841
      %v2857 = vadd.f32 %v2817, %v2841
      %v2858 = vadd.f32 %v2818, %v2841
      %v2859 = vadd.f32 %v2819, %v2841
      %v2860 = vadd.f32 %v2820, %v2841
      %v2861 = vadd.f32 %v2821, %v2841
      %v2862 = vadd.f32 %v2822, %v2841
      %v2863 = vadd.f32 %v2823, %v2841
      %v2864 = vadd.f32 %v2824, %v2841
      %v2865 = vadd.f32 %v2825, %v2841
      %v2866 = vadd.f32 %v2826, %v2841
      %v2867 = vadd.f32 %v2827, %v2841
      %v2868 = vadd.f32 %v2828, %v2841
      %v2869 = vadd.f32 %v2829, %v2841
      %v2870 = vadd.f32 %v2830, %v2841
      %v2871 = vadd.f32 %v2831, %v2841
      %v2872 = vadd.f32 %v2832, %v2841
      %v2873 = vadd.f32 %v2833, %v2841
      %v2874 = vadd.f32 %v2834, %v2841
      %v2875 = vmax.f32 %v2843, 0.0
      %v2876 = vmax.f32 %v2844, 0.0
      %v2877 = vmax.f32 %v2845, 0.0
      %v2878 = vmax.f32 %v2846, 0.0
      %v2879 = vmax.f32 %v2847, 0.0
      %v2880 = vmax.f32 %v2848, 0.0
      %v2881 = vmax.f32 %v2849, 0.0
      %v2882 = vmax.f32 %v2850, 0.0
      %v2883 = vmax.f32 %v2851, 0.0
      %v2884 = vmax.f32 %v2852, 0.0
      %v2885 = vmax.f32 %v2853, 0.0
      %v2886 = vmax.f32 %v2854, 0.0
      %v2887 = vmax.f32 %v2855, 0.0
      %v2888 = vmax.f32 %v2856, 0.0
      %v2889 = vmax.f32 %v2857, 0.0
      %v2890 = vmax.f32 %v2858, 0.0
      %v2891 = vmax.f32 %v2859, 0.0
      %v2892 = vmax.f32 %v2860, 0.0
      %v2893 = vmax.f32 %v2861, 0.0
      %v2894 = vmax.f32 %v2862, 0.0
      %v2895 = vmax.f32 %v2863, 0.0
      %v2896 = vmax.f32 %v2864, 0.0
      %v2897 = vmax.f32 %v2865, 0.0
      %v2898 = vmax.f32 %v2866, 0.0
      %v2899 = vmax.f32 %v2867, 0.0
      %v2900 = vmax.f32 %v2868, 0.0
      %v2901 = vmax.f32 %v2869, 0.0
      %v2902 = vmax.f32 %v2870, 0.0
      %v2903 = vmax.f32 %v2871, 0.0
      %v2904 = vmax.f32 %v2872, 0.0
      %v2905 = vmax.f32 %v2873, 0.0
      %v2906 = vmax.f32 %v2874, 0.0
      %vm2907 = vcmask 1048448
      %v2908 = vsel %vm2907, %v2875, -inf
      %vm2909 = vcmask 1044352
      %v2910 = vsel %vm2909, %v2876, -inf
      %v2911 = vmax.f32 %v2908, %v2910
      %v2912 = vrot.slane %v2911, 4
      %v2913 = vmax.f32 %v2911, %v2912
      %v2914 = vrot.slane %v2913, 2
      %v2915 = vmax.f32 %v2913, %v2914
      %v2916 = vrot.slane %v2915, 1
      %v2917 = vmax.f32 %v2915, %v2916
      %v2918 = vsel %vm2907, %v2877, -inf
      %v2919 = vsel %vm2909, %v2878, -inf
      %v2920 = vmax.f32 %v2918, %v2919
      %v2921 = vrot.slane %v2920, 4
      %v2922 = vmax.f32 %v2920, %v2921
      %v2923 = vrot.slane %v2922, 2
      %v2924 = vmax.f32 %v2922, %v2923
      %v2925 = vrot.slane %v2924, 1
      %v2926 = vmax.f32 %v2924, %v2925
      %v2927 = vsel %vm2907, %v2879, -inf
      %v2928 = vsel %vm2909, %v2880, -inf
      %v2929 = vmax.f32 %v2927, %v2928
      %v2930 = vrot.slane %v2929, 4
      %v2931 = vmax.f32 %v2929, %v2930
      %v2932 = vrot.slane %v2931, 2
      %v2933 = vmax.f32 %v2931, %v2932
      %v2934 = vrot.slane %v2933, 1
      %v2935 = vmax.f32 %v2933, %v2934
      %v2936 = vsel %vm2907, %v2881, -inf
      %v2937 = vsel %vm2909, %v2882, -inf
      %v2938 = vmax.f32 %v2936, %v2937
      %v2939 = vrot.slane %v2938, 4
      %v2940 = vmax.f32 %v2938, %v2939
      %v2941 = vrot.slane %v2940, 2
      %v2942 = vmax.f32 %v2940, %v2941
      %v2943 = vrot.slane %v2942, 1
      %v2944 = vmax.f32 %v2942, %v2943
      %v2945 = vsel %vm2907, %v2883, -inf
      %v2946 = vsel %vm2909, %v2884, -inf
      %v2947 = vmax.f32 %v2945, %v2946
      %v2948 = vrot.slane %v2947, 4
      %v2949 = vmax.f32 %v2947, %v2948
      %v2950 = vrot.slane %v2949, 2
      %v2951 = vmax.f32 %v2949, %v2950
      %v2952 = vrot.slane %v2951, 1
      %v2953 = vmax.f32 %v2951, %v2952
      %v2954 = vsel %vm2907, %v2885, -inf
      %v2955 = vsel %vm2909, %v2886, -inf
      %v2956 = vmax.f32 %v2954, %v2955
      %v2957 = vrot.slane %v2956, 4
      %v2958 = vmax.f32 %v2956, %v2957
      %v2959 = vrot.slane %v2958, 2
      %v2960 = vmax.f32 %v2958, %v2959
      %v2961 = vrot.slane %v2960, 1
      %v2962 = vmax.f32 %v2960, %v2961
      %v2963 = vsel %vm2907, %v2887, -inf
      %v2964 = vsel %vm2909, %v2888, -inf
      %v2965 = vmax.f32 %v2963, %v2964
      %v2966 = vrot.slane %v2965, 4
      %v2967 = vmax.f32 %v2965, %v2966
      %v2968 = vrot.slane %v2967, 2
      %v2969 = vmax.f32 %v2967, %v2968
      %v2970 = vrot.slane %v2969, 1
      %v2971 = vmax.f32 %v2969, %v2970
      %v2972 = vsel %vm2907, %v2889, -inf
      %v2973 = vsel %vm2909, %v2890, -inf
      %v2974 = vmax.f32 %v2972, %v2973
      %v2975 = vrot.slane %v2974, 4
      %v2976 = vmax.f32 %v2974, %v2975
      %v2977 = vrot.slane %v2976, 2
      %v2978 = vmax.f32 %v2976, %v2977
      %v2979 = vrot.slane %v2978, 1
      %v2980 = vmax.f32 %v2978, %v2979
      %v2981 = vsel %vm2907, %v2891, -inf
      %v2982 = vsel %vm2909, %v2892, -inf
      %v2983 = vmax.f32 %v2981, %v2982
      %v2984 = vrot.slane %v2983, 4
      %v2985 = vmax.f32 %v2983, %v2984
      %v2986 = vrot.slane %v2985, 2
      %v2987 = vmax.f32 %v2985, %v2986
      %v2988 = vrot.slane %v2987, 1
      %v2989 = vmax.f32 %v2987, %v2988
      %v2990 = vsel %vm2907, %v2893, -inf
      %v2991 = vsel %vm2909, %v2894, -inf
      %v2992 = vmax.f32 %v2990, %v2991
      %v2993 = vrot.slane %v2992, 4
      %v2994 = vmax.f32 %v2992, %v2993
      %v2995 = vrot.slane %v2994, 2
      %v2996 = vmax.f32 %v2994, %v2995
      %v2997 = vrot.slane %v2996, 1
      %v2998 = vmax.f32 %v2996, %v2997
      %v2999 = vsel %vm2907, %v2895, -inf
      %v3000 = vsel %vm2909, %v2896, -inf
      %v3001 = vmax.f32 %v2999, %v3000
      %v3002 = vrot.slane %v3001, 4
      %v3003 = vmax.f32 %v3001, %v3002
      %v3004 = vrot.slane %v3003, 2
      %v3005 = vmax.f32 %v3003, %v3004
      %v3006 = vrot.slane %v3005, 1
      %v3007 = vmax.f32 %v3005, %v3006
      %v3008 = vsel %vm2907, %v2897, -inf
      %v3009 = vsel %vm2909, %v2898, -inf
      %v3010 = vmax.f32 %v3008, %v3009
      %v3011 = vrot.slane %v3010, 4
      %v3012 = vmax.f32 %v3010, %v3011
      %v3013 = vrot.slane %v3012, 2
      %v3014 = vmax.f32 %v3012, %v3013
      %v3015 = vrot.slane %v3014, 1
      %v3016 = vmax.f32 %v3014, %v3015
      %v3017 = vsel %vm2907, %v2899, -inf
      %v3018 = vsel %vm2909, %v2900, -inf
      %v3019 = vmax.f32 %v3017, %v3018
      %v3020 = vrot.slane %v3019, 4
      %v3021 = vmax.f32 %v3019, %v3020
      %v3022 = vrot.slane %v3021, 2
      %v3023 = vmax.f32 %v3021, %v3022
      %v3024 = vrot.slane %v3023, 1
      %v3025 = vmax.f32 %v3023, %v3024
      %v3026 = vsel %vm2907, %v2901, -inf
      %v3027 = vsel %vm2909, %v2902, -inf
      %v3028 = vmax.f32 %v3026, %v3027
      %v3029 = vrot.slane %v3028, 4
      %v3030 = vmax.f32 %v3028, %v3029
      %v3031 = vrot.slane %v3030, 2
      %v3032 = vmax.f32 %v3030, %v3031
      %v3033 = vrot.slane %v3032, 1
      %v3034 = vmax.f32 %v3032, %v3033
      %v3035 = vsel %vm2907, %v2903, -inf
      %v3036 = vsel %vm2909, %v2904, -inf
      %v3037 = vmax.f32 %v3035, %v3036
      %v3038 = vrot.slane %v3037, 4
      %v3039 = vmax.f32 %v3037, %v3038
      %v3040 = vrot.slane %v3039, 2
      %v3041 = vmax.f32 %v3039, %v3040
      %v3042 = vrot.slane %v3041, 1
      %v3043 = vmax.f32 %v3041, %v3042
      %v3044 = vsel %vm2907, %v2905, -inf
      %v3045 = vsel %vm2909, %v2906, -inf
      %v3046 = vmax.f32 %v3044, %v3045
      %v3047 = vrot.slane %v3046, 4
      %v3048 = vmax.f32 %v3046, %v3047
      %v3049 = vrot.slane %v3048, 2
      %v3050 = vmax.f32 %v3048, %v3049
      %v3051 = vrot.slane %v3050, 1
      %v3052 = vmax.f32 %v3050, %v3051
      %vm3069 = vcmask 1041409
      %v3070 = vsel %vm3069, %v1576, %v1567
      %vm3071 = vcmask 1042434
      %v3072 = vsel %vm3071, %v1585, %v3070
      %vm3073 = vcmask 1043459
      %v3074 = vsel %vm3073, %v1594, %v3072
      %vm3075 = vcmask 1044484
      %v3076 = vsel %vm3075, %v1603, %v3074
      %vm3077 = vcmask 1045509
      %v3078 = vsel %vm3077, %v1612, %v3076
      %vm3079 = vcmask 1046534
      %v3080 = vsel %vm3079, %v1621, %v3078
      %vm3081 = vcmask 1047559
      %v3082 = vsel %vm3081, %v1630, %v3080
      %v3083 = vsel %vm3069, %v1648, %v1639
      %v3084 = vsel %vm3071, %v1657, %v3083
      %v3085 = vsel %vm3073, %v1666, %v3084
      %v3086 = vsel %vm3075, %v1675, %v3085
      %v3087 = vsel %vm3077, %v1684, %v3086
      %v3088 = vsel %vm3079, %v1693, %v3087
      %v3089 = vsel %vm3081, %v1702, %v3088
      %v3108 = vsel %vm3069, %v1971, %v1962
      %v3109 = vsel %vm3071, %v1980, %v3108
      %v3110 = vsel %vm3073, %v1989, %v3109
      %v3111 = vsel %vm3075, %v1998, %v3110
      %v3112 = vsel %vm3077, %v2007, %v3111
      %v3113 = vsel %vm3079, %v2016, %v3112
      %v3114 = vsel %vm3081, %v2025, %v3113
      %v3115 = vsel %vm3069, %v2043, %v2034
      %v3116 = vsel %vm3071, %v2052, %v3115
      %v3117 = vsel %vm3073, %v2061, %v3116
      %v3118 = vsel %vm3075, %v2070, %v3117
      %v3119 = vsel %vm3077, %v2079, %v3118
      %v3120 = vsel %vm3079, %v2088, %v3119
      %v3121 = vsel %vm3081, %v2097, %v3120
      %3122 = vrot.lane.b32.xlu0 %v3114, 96
      %v3123 = vpop.permute.xlu0 %3122
      %3124 = vrot.lane.b32.xlu0 %v3121, 96
      %v3125 = vpop.permute.xlu0 %3124
      %v3144 = vsel %vm3069, %v2926, %v2917
      %v3145 = vsel %vm3071, %v2935, %v3144
      %v3146 = vsel %vm3073, %v2944, %v3145
      %v3147 = vsel %vm3075, %v2953, %v3146
      %v3148 = vsel %vm3077, %v2962, %v3147
      %v3149 = vsel %vm3079, %v2971, %v3148
      %v3150 = vsel %vm3081, %v2980, %v3149
      %v3151 = vsel %vm3069, %v2998, %v2989
      %v3152 = vsel %vm3071, %v3007, %v3151
      %v3153 = vsel %vm3073, %v3016, %v3152
      %v3154 = vsel %vm3075, %v3025, %v3153
      %v3155 = vsel %vm3077, %v3034, %v3154
      %v3156 = vsel %vm3079, %v3043, %v3155
      %v3157 = vsel %vm3081, %v3052, %v3156
      %3158 = vrot.lane.b32.xlu0 %v3150, 48
      %v3159 = vpop.permute.xlu0 %3158
      %3160 = vrot.lane.b32.xlu0 %v3157, 48
      %v3161 = vpop.permute.xlu0 %3160
      %v3164 = vsel %vm1557, %v3082, %v3123
      %v3165 = vsel %vm1557, %v3089, %v3125
      %v3166 = vsel %vm748, %v3164, %v3159
      %v3167 = vsel %vm748, %v3165, %v3161
      %v3168 = vld [vmem:[%s4] sm:$0xff]
      %v3169 = vld [vmem:[%s4 + $0x8] sm:$0xff]
      %v3170 = vld [vmem:[%s4 + $0x10] sm:$0xff]
      %v3171 = vld [vmem:[%s4 + $0x18] sm:$0xff]
      %v3172 = vld [vmem:[%s4 + $0x20] sm:$0xff]
      %v3173 = vld [vmem:[%s4 + $0x28] sm:$0xff]
      %v3174 = vld [vmem:[%s5] sm:$0x1]
      %v3176 = vlaneseq
      %v3177 = vshrl.u32 %v3176, 7
      %v3178 = vsub.s32 0, %v3177
      %v3179 = vrot.slane %v3174, %v3178
      %vm3181 = vcmask 392192
      %v3183 = vsel %vm3181, %v3166, 0
      %v3186 = vsel %vm3181, %v3167, 0
      %3188 = vmatprep.subr.mxu0 0.0
      %3189 = vmatpush1.msra.mxu0 %v3168
      %3190 = vmatprep.subr.mxu0 0.0
      %3191 = vmatpush1.msra.mxu0 %v3169
      %3192 = vmatprep.subr.mxu0 0.0
      %3193 = vmatpush1.msra.mxu0 %v3170
      %3194 = vmatprep.subr.mxu0 0.0
      %3195 = vmatpush1.msra.mxu0 %v3171
      %3196 = vmatprep.subr.mxu0 0.0
      %3197 = vmatpush1.msra.mxu0 %v3172
      %3198 = vmatprep.subr.mxu0 0.0
      %3199 = vmatpush1.msra.mxu0 %v3173
      %3200 = vmatprep.subr.mxu0 0.0
      %3201 = vmatpush1.msra.mxu0 0.0
      %3202 = vmatprep.subr.mxu0 0.0
      %3203 = vmatpush1.msra.mxu0 0.0
      %3204 = vmatprep.subr.mxu0 0.0
      %3205 = vmatpush1.msra.mxu0 0.0
      %3206 = vmatprep.subr.mxu0 0.0
      %3207 = vmatpush1.msra.mxu0 0.0
      %3208 = vmatprep.subr.mxu0 0.0
      %3209 = vmatpush1.msra.mxu0 0.0
      %3210 = vmatprep.subr.mxu0 0.0
      %3211 = vmatpush1.msra.mxu0 0.0
      %3212 = vmatprep.subr.mxu0 0.0
      %3213 = vmatpush1.msra.mxu0 0.0
      %3214 = vmatprep.subr.mxu0 0.0
      %3215 = vmatpush1.msra.mxu0 0.0
      %3216 = vmatprep.subr.mxu0 0.0
      %3217 = vmatpush1.msra.mxu0 0.0
      %3218 = vmatprep.subr.mxu0 0.0
      %3219 = vmatpush1.msra.mxu0 0.0
      %3220 = vmatprep.subr.mxu0 0.0
      %3221 = vmatpush1.msra.mxu0 0.0
      %3222 = vmatprep.subr.mxu0 0.0
      %3223 = vmatpush1.msra.mxu0 0.0
      %3224 = vmatprep.subr.mxu0 0.0
      %3225 = vmatpush1.msra.mxu0 0.0
      %3226 = vmatprep.subr.mxu0 0.0
      %3227 = vmatpush1.msra.mxu0 0.0
      %3228 = vmatprep.subr.mxu0 0.0
      %3229 = vmatpush1.msra.mxu0 0.0
      %3230 = vmatprep.subr.mxu0 0.0
      %3231 = vmatpush1.msra.mxu0 0.0
      %3232 = vmatprep.subr.mxu0 0.0
      %3233 = vmatpush1.msra.mxu0 0.0
      %3234 = vmatprep.subr.mxu0 0.0
      %3235 = vmatpush1.msra.mxu0 0.0
      %3236 = vmatprep.subr.mxu0 0.0
      %3237 = vmatpush1.msra.mxu0 0.0
      %3238 = vmatprep.subr.mxu0 0.0
      %3239 = vmatpush1.msra.mxu0 0.0
      %3240 = vmatprep.subr.mxu0 0.0
      %3241 = vmatpush1.msra.mxu0 0.0
      %3242 = vmatprep.subr.mxu0 0.0
      %3243 = vmatpush1.msra.mxu0 0.0
      %3244 = vmatprep.subr.mxu0 0.0
      %3245 = vmatpush1.msra.mxu0 0.0
      %3246 = vmatprep.subr.mxu0 0.0
      %3247 = vmatpush1.msra.mxu0 0.0
      %3248 = vmatprep.subr.mxu0 0.0
      %3249 = vmatpush1.msra.mxu0 0.0
      %3250 = vmatprep.subr.mxu0 0.0
      %3251 = vmatpush1.msra.mxu0 0.0
      %3252 = vmatprep.mubr.f32.mxu0 0.0
      %3253 = vmatmul.mubr.f32.gmra.mrb[0].mxu0 %v3183
      %v3254 = vpop.f32.mrb[0].mxu0
      %v3255 = vadd.f32 %v3179, %v3254
      %v3256 = vpop.f32.mrb[0].mxu0
      %3257 = vmatprep.mubr.f32.mxu0 0.0
      %3258 = vmatmul.mubr.f32.gmra.mrb[0].mxu0 %v3186
      %v3259 = vpop.f32.mrb[0].mxu0
      %v3260 = vadd.f32 %v3179, %v3259
      %v3261 = vpop.f32.mrb[0].mxu0
      %3262 = vdwg.mxu0
      %vm3263 = vcmask 31744
      %v3264 = vsel %vm3263, %v3255, -inf
      %3265 = vmax.xlane.f32.xlu0 %v3264
      %v3266 = vpop.xlane.xlu0 %3265
      %v3267 = vsel %vm3263, %v3260, -inf
      %3268 = vmax.xlane.f32.xlu0 %v3267
      %v3269 = vpop.xlane.xlu0 %3268
      %v3270 = vsub.f32 %v3255, %v3266
      %v3271 = vsub.f32 %v3260, %v3269
      %v3272 = vmul.f32 %v3270, 1.442695
      %v3273 = vpow.pop %v3272
      %v3274 = vmul.f32 %v3271, 1.442695
      %v3275 = vpow.pop %v3274
      %v3276 = vsel %vm3263, %v3273, 0.0
      %3277 = vadd.xlane.f32.xlu0 %v3276
      %v3278 = vpop.xlane.xlu0 %3277
      %v3279 = vsel %vm3263, %v3275, 0.0
      %3280 = vadd.xlane.f32.xlu0 %v3279
      %v3281 = vpop.xlane.xlu0 %3280
      %v3282 = vrcp.pop %v3278
      %v3283 = vrcp.pop %v3281
      %v3284 = vmul.f32 %v3273, %v3282
      %v3285 = vmul.f32 %v3275, %v3283
      %3286 = vrot.lane.b32.xlu0 %v3166, 4
      %v3287 = vpop.permute.xlu0 %3286
      %3288 = vrot.lane.b32.xlu0 %v3167, 4
      %v3289 = vpop.permute.xlu0 %3288
      %v3292 = vsel %vm3263, %v3284, %v3287
      %v3293 = vsel %vm3263, %v3285, %v3289
      %vm3294 = vcmask 424960
      %v3295 = vsel %vm3294, %v3292, 0.0
      %v3296 = vsel %vm3294, %v3293, 0.0
      %3297 = vst [vmem:[%s253] sm:$0xff] %v3295
      %3298 = vst [vmem:[%s253 + $0x8] sm:$0xff] %v3296
      %s3299 = smul.u32 2, %s17
      %p3300 = scmp.lt.s32.totalorder %s3299, 3
      %s3301 = scalar_select %p3300, %s3299, 3
      %s3302 = smul.addr %s3301, 8
      %s3303 = scalar_lea.vmem %s6, %s3302
      // Predicated region
      $region45: #{cnn_forward.1} parent=43 // pred_check
        %p3304 = pneg %p166
      $region46: #{cnn_forward.1} parent=43 // pred_check_branch
        %3306 = sbr.rel (%p3304) target = $region48
      $region47: #{cnn_forward.1} parent=43 // pred_region
        %s3307 = smul.u32 2, %s17
      $region48: #{cnn_forward.1} parent=43 // pred_fallthru
        _
    $region44: #{cnn_forward.1} parent=5 // pred_fallthru
      _
    %p3308 = scmp.le.s32.totalorder 2, %s12
    // Predicated region
    $region49: #{cnn_forward.1} parent=5 // pred_check
      %p3309 = pneg %p3308
    $region50: #{cnn_forward.1} parent=5 // pred_check_branch
      %3311 = sbr.rel (%p3309) target = $region52
    $region51: #{cnn_forward.1} parent=5 // pred_region
      %s3312 = ssub.s32 %s12, 2
      // Predicated region
      $region53: #{cnn_forward.1} parent=51 // pred_check
        %p3313 = pneg %p172
      $region54: #{cnn_forward.1} parent=51 // pred_check_branch
        %3315 = sbr.rel (%p3313) target = $region56
      $region55: #{cnn_forward.1} parent=51 // pred_region
        %s3316 = smul.u32 2, %s18
        %p3317 = scmp.lt.s32.totalorder %s3316, 3
        %s3318 = scalar_select %p3317, %s3316, 3
        %s3319 = smul.addr %s3318, 8
        %s3320 = scalar_lea.vmem %s6, %s3319
      $region56: #{cnn_forward.1} parent=51 // pred_fallthru
        _
    $region52: #{cnn_forward.1} parent=5 // pred_fallthru
      _
  $region6: #{cnn_forward.1} parent=0 // loop_footer
    %s16 = sadd.s32 1, %s12
  $region7: #{cnn_forward.1} parent=0 // loop_footer_branch
    %11 = sbr.rel target = $region3
  $region8: #{cnn_forward.1} parent=0 // loop_exit
    _

</llo_original>
